<compile_context>
chip_gen: v5e
topology: v5e:2x2
jax: 0.10.0
libtpu: 0.0.40
codegen_flags: <defaults>
</compile_context>

<pallas_src>
import math
from functools import partial

import jax
import jax.numpy as jnp
from jax import lax
from jax.experimental import pallas as pl
from jax.experimental.pallas import tpu as pltpu

LN_EPS = 1e-5
GELU_K = math.sqrt(2.0 / math.pi)
NEG_BIG = -1e30  # large finite negative for masking (avoids -inf NaN hazards)


def _layer_norm(x, w, b):
    mu = jnp.mean(x, axis=-1, keepdims=True)
    var = jnp.mean((x - mu) * (x - mu), axis=-1, keepdims=True)
    return (x - mu) * lax.rsqrt(var + LN_EPS) * w + b


def _gelu(x):
    return 0.5 * x * (1.0 + jnp.tanh(GELU_K * (x + 0.044715 * x * x * x)))


def transformer_block_kernel(
    x_ref,                    # (M, C) f32, M = block_b * T rows (sample-major)
    ln1w_ref, ln1b_ref,       # (1, C) f32
    wqkv_ref, bqkv_ref,       # (C, 3C) bf16 (1/sqrt(D) folded into Q cols), (1, 3C) f32
    wproj_ref, bproj_ref,     # (C, C) bf16, (1, C) f32
    ln2w_ref, ln2b_ref,       # (1, C) f32
    w1_ref, b1_ref,           # (C, 4C) bf16, (1, 4C) f32
    w2_ref, b2_ref,           # (4C, C) bf16, (1, C) f32
    o_ref,                    # (M, C)
    *, n_heads, block_b, seq_len,
):
    f32, bf16 = jnp.float32, jnp.bfloat16
    x = x_ref[...]                             # (M, C) f32
    M, C = x.shape
    H, T, Bb = n_heads, seq_len, block_b
    D = C // H
    G = Bb * H                                 # flat batch of attention heads

    # ---- attention branch ---------------------------------------------------
    h = _layer_norm(x, ln1w_ref[...], ln1b_ref[...])                   # (M, C) f32
    # Single lane-dense projection: K = C, N = 3C (full MXU width / depth).
    qkv = jnp.dot(h.astype(bf16), wqkv_ref[...],
                  preferred_element_type=f32) + bqkv_ref[...]          # (M, 3C) f32
    qkv = qkv.reshape(Bb, T, 3 * C)            # leading-dim split only (lanes untouched)

    def split_heads(base):
        # static lane slices -> (Bb, H, T, D) -> (G, T, D): pure relayout, no matmuls
        hs = [qkv[:, :, base + i * D: base + (i + 1) * D] for i in range(H)]
        return jnp.stack(hs, axis=1).reshape(G, T, D)

    q = split_heads(0)          # 1/sqrt(D) already folded into the Q weights/bias
    k = split_heads(C)
    v = split_heads(2 * C)

    # causal mask, broadcast over all Bb*H heads.
    # TODO(synk): for production T, switch to a KV-tiled online-softmax loop and build
    # the mask per (q-tile, kv-tile) from iota offsets instead of a full (T, T) mask.
    row = lax.broadcasted_iota(jnp.int32, (T, T), 0)
    col = lax.broadcasted_iota(jnp.int32, (T, T), 1)
    causal = (col <= row)[None]                                        # (1, T, T)

    att = jnp.einsum("gqd,gkd->gqk", q.astype(bf16), k.astype(bf16),
                     preferred_element_type=f32)                       # (G, T, T) f32
    att = jnp.where(causal, att, NEG_BIG)
    att = att - jnp.max(att, axis=-1, keepdims=True)
    p = jnp.exp(att)
    p = p * pl.reciprocal(jnp.sum(p, axis=-1, keepdims=True), approx=True)

    ctx = jnp.einsum("gqk,gkd->gqd", p.astype(bf16), v.astype(bf16),
                     preferred_element_type=f32)                       # (G, T, D) f32

    # relayout heads back to a lane-flat (M, C) slab, then ONE K=C output projection
    ctx = ctx.reshape(Bb, H, T, D)
    ctx_flat = jnp.concatenate([ctx[:, i] for i in range(H)], axis=-1)  # (Bb, T, C)
    ctx_flat = ctx_flat.reshape(M, C)

    y = jnp.dot(ctx_flat.astype(bf16), wproj_ref[...],
                preferred_element_type=f32) + bproj_ref[...]            # (M, C)
    x1 = x + y                                                          # residual 1

    # ---- feed-forward branch ------------------------------------------------
    h2 = _layer_norm(x1, ln2w_ref[...], ln2b_ref[...])
    a = jnp.dot(h2.astype(bf16), w1_ref[...],
                preferred_element_type=f32) + b1_ref[...]               # (M, 4C)
    g = _gelu(a)                                                        # f32 elementwise
    f = jnp.dot(g.astype(bf16), w2_ref[...],
                preferred_element_type=f32) + b2_ref[...]               # (M, C)

    o_ref[...] = (x1 + f).astype(o_ref.dtype)                           # residual 2


def prepare_params(params, n_heads):
    """One-time weight prep (init-side, NOT per forward call):
       bf16 casts for matmul operands + fold 1/sqrt(head_dim) into Q cols of c_attn."""
    C = params["wproj_t"].shape[0]
    D = C // n_heads
    scale = 1.0 / math.sqrt(D)
    col_scale = jnp.concatenate(
        [jnp.full((C,), scale, jnp.float32), jnp.ones((2 * C,), jnp.float32)])
    f32, bf16 = jnp.float32, jnp.bfloat16
    return {
        "ln1_w": params["ln1_w"].astype(f32), "ln1_b": params["ln1_b"].astype(f32),
        "wqkv": (params["wqkv_t"] * col_scale[None, :]).astype(bf16),
        "bqkv": (params["bqkv"] * col_scale[None, :]).astype(f32),
        "wproj": params["wproj_t"].astype(bf16), "bproj": params["bproj"].astype(f32),
        "ln2_w": params["ln2_w"].astype(f32), "ln2_b": params["ln2_b"].astype(f32),
        "w1": params["w1_t"].astype(bf16), "b1": params["b1"].astype(f32),
        "w2": params["w2_t"].astype(bf16), "b2": params["b2"].astype(f32),
    }


def transformer_block(x, prep, n_heads, block_b=None):
    """x: (B, T, C) f32.  prep: output of prepare_params()."""
    B, T, C = x.shape
    assert C % n_heads == 0
    if block_b is None:
        # Fill the MXU M dimension (~128 rows) per grid step while keeping whole
        # samples per block (attention must not mix samples).  NOTE(v7x): with tiny B
        # this can leave a single "parallel" grid unit; once T is tiled a parallel
        # T axis should provide the second unit instead of shrinking block_b.
        block_b = max(1, min(B, 128 // max(T, 1)))
        while B % block_b:
            block_b -= 1
    M = block_b * T
    grid = (B // block_b,)

    x2 = x.reshape(B * T, C)   # free row-major reshape; kernel works on (M, C) slabs
    names = ("ln1_w", "ln1_b", "wqkv", "bqkv", "wproj", "bproj",
             "ln2_w", "ln2_b", "w1", "b1", "w2", "b2")
    plist = [prep[n] for n in names]

    # advisory cost estimate for the XLA scheduler
    flops = (2 * B * T * C * (3 * C + C + 4 * C + 4 * C)
             + 4 * B * n_heads * T * T * (C // n_heads))
    transcendentals = B * n_heads * T * T + B * T * 4 * C + 2 * B * T + B * n_heads * T
    bytes_accessed = int(2 * x.size * x.dtype.itemsize
                         + sum(int(p.size) * p.dtype.itemsize for p in plist))

    def run(single_buffer_weights):
        def w_spec(p):
            # weights are grid-invariant; single-buffer them to halve resident VMEM
            if single_buffer_weights:
                return pl.BlockSpec(p.shape, lambda b: (0, 0),
                                    pipeline_mode=pl.Buffered(1))
            return pl.BlockSpec(p.shape, lambda b: (0, 0))

        return pl.pallas_call(
            partial(transformer_block_kernel, n_heads=n_heads,
                    block_b=block_b, seq_len=T),
            out_shape=jax.ShapeDtypeStruct((B * T, C), x.dtype),
            grid=grid,
            in_specs=[pl.BlockSpec((M, C), lambda b: (b, 0))]
                     + [w_spec(p) for p in plist],
            out_specs=pl.BlockSpec((M, C), lambda b: (b, 0)),
            compiler_params=pltpu.CompilerParams(
                dimension_semantics=("parallel",),
                vmem_limit_bytes=48 * 1024 * 1024),
            cost_estimate=pl.CostEstimate(
                flops=int(flops), transcendentals=int(transcendentals),
                bytes_accessed=bytes_accessed),
        )(x2, *plist)

    # TODO(synk): for production shapes add KV-tiled online-softmax attention and row
    # tiling of the LN/FF matmuls (sized to v7x's 64 MiB VMEM), plus a lane-dense
    # output slab for small C on v5e; at T=8, C=32 one (block_b*T, C) slab is optimal.
    try:
        out2 = run(True)
    except Exception:            # pl.Buffered(1) unsupported by this build -> default
        out2 = run(False)
    return out2.reshape(B, T, C)


# ---------------------------------------------------------------------------
# pure-JAX f32 reference (mirrors the PyTorch forward exactly, dropout = id)
# ---------------------------------------------------------------------------
def reference_block(x, params, n_heads):
    B, T, C = x.shape
    D = C // n_heads

    def ln(v, w, b):
        mu = jnp.mean(v, -1, keepdims=True)
        var = jnp.mean((v - mu) ** 2, -1, keepdims=True)
        return (v - mu) / jnp.sqrt(var + LN_EPS) * w + b

    h = ln(x, params["ln1_w"], params["ln1_b"])
    qkv = h @ params["wqkv_t"] + params["bqkv"]
    q, k, v = jnp.split(qkv, 3, axis=-1)
    q = q.reshape(B, T, n_heads, D).transpose(0, 2, 1, 3)
    k = k.reshape(B, T, n_heads, D).transpose(0, 2, 1, 3)
    v = v.reshape(B, T, n_heads, D).transpose(0, 2, 1, 3)
    att = (q @ k.transpose(0, 1, 3, 2)) / math.sqrt(D)
    mask = jnp.tril(jnp.ones((T, T), bool))
    att = jnp.where(mask[None, None], att, -jnp.inf)
    att = jax.nn.softmax(att, axis=-1)
    y = (att @ v).transpose(0, 2, 1, 3).reshape(B, T, C)
    y = y @ params["wproj_t"] + params["bproj"]
    x1 = x + y
    h2 = ln(x1, params["ln2_w"], params["ln2_b"])
    a = h2 @ params["w1_t"] + params["b1"]
    g = 0.5 * a * (1.0 + jnp.tanh(GELU_K * (a + 0.044715 * a ** 3)))
    f = g @ params["w2_t"] + params["b2"]
    return x1 + f


def init_params(key, emb_dim):
    C = emb_dim
    ks = jax.random.split(key, 8)
    s = 0.02
    return {
        "ln1_w": jnp.ones((1, C), jnp.float32),
        "ln1_b": jnp.zeros((1, C), jnp.float32),
        "ln2_w": jnp.ones((1, C), jnp.float32),
        "ln2_b": jnp.zeros((1, C), jnp.float32),
        # c_attn: Linear(C, 3C) -> W^T of shape (C, 3C)
        "wqkv_t": s * jax.random.normal(ks[0], (C, 3 * C), jnp.float32),
        "bqkv": s * jax.random.normal(ks[1], (1, 3 * C), jnp.float32),
        # c_proj: Linear(C, C)
        "wproj_t": s * jax.random.normal(ks[2], (C, C), jnp.float32),
        "bproj": s * jax.random.normal(ks[3], (1, C), jnp.float32),
        # FeedForward: Linear(C, 4C), Linear(4C, C)
        "w1_t": s * jax.random.normal(ks[4], (C, 4 * C), jnp.float32),
        "b1": s * jax.random.normal(ks[5], (1, 4 * C), jnp.float32),
        "w2_t": s * jax.random.normal(ks[6], (4 * C, C), jnp.float32),
        "b2": s * jax.random.normal(ks[7], (1, C), jnp.float32),
    }


if __name__ == "__main__":
    # config: emb_dim=32, n_heads=4, context_length=8, drop_rate=0.0, qkv_bias=True
    B, T, C, H = 2, 8, 32, 4

    key = jax.random.PRNGKey(0)
    k_x, k_p = jax.random.split(key)
    x = jax.random.normal(k_x, (B, T, C), jnp.float32)
    params = init_params(k_p, C)
    prep = prepare_params(params, H)          # one-time init-side weight relayout

    out = transformer_block(x, prep, n_heads=H)
    out = jax.block_until_ready(out)

    ref = reference_block(x, params, n_heads=H)
    assert out.shape == (B, T, C)
    # bf16 matmul operands (f32 accumulation) + approx reciprocal -> relaxed tol
    err = jnp.max(jnp.abs(out - ref))
    assert jnp.allclose(out, ref, atol=2e-2, rtol=2e-2), f"max abs err {err}"

    print("KERNEL_OK")
</pallas_src>

<mosaic_0001>
module attributes {stable_mosaic.version = 11 : i64} {
  func.func @transformer_block_kernel(%arg0: i32, %arg1: memref<16x32xf32, #tpu.memory_space<vmem>>, %arg2: memref<1x32xf32, #tpu.memory_space<vmem>>, %arg3: memref<1x32xf32, #tpu.memory_space<vmem>>, %arg4: memref<32x96xbf16, #tpu.memory_space<vmem>>, %arg5: memref<1x96xf32, #tpu.memory_space<vmem>>, %arg6: memref<32x32xbf16, #tpu.memory_space<vmem>>, %arg7: memref<1x32xf32, #tpu.memory_space<vmem>>, %arg8: memref<1x32xf32, #tpu.memory_space<vmem>>, %arg9: memref<1x32xf32, #tpu.memory_space<vmem>>, %arg10: memref<32x128xbf16, #tpu.memory_space<vmem>>, %arg11: memref<1x128xf32, #tpu.memory_space<vmem>>, %arg12: memref<128x32xbf16, #tpu.memory_space<vmem>>, %arg13: memref<1x32xf32, #tpu.memory_space<vmem>>, %arg14: memref<16x32xf32, #tpu.memory_space<vmem>>) attributes {dimension_semantics = [#tpu.dimension_semantics<parallel>], iteration_bounds = array<i64: 1>, scalar_prefetch = 0 : i64, scratch_operands = 0 : i64, tpu.core_type = #tpu.core_type<tc>, window_params = [{transform_indices = @transform_0, window_bounds = array<i64: 16, 32>}, {pipeline_mode = #tpu.pipeline_mode<synchronous>, transform_indices = @transform_1, window_bounds = array<i64: 1, 32>}, {pipeline_mode = #tpu.pipeline_mode<synchronous>, transform_indices = @transform_2, window_bounds = array<i64: 1, 32>}, {pipeline_mode = #tpu.pipeline_mode<synchronous>, transform_indices = @transform_3, window_bounds = array<i64: 32, 96>}, {pipeline_mode = #tpu.pipeline_mode<synchronous>, transform_indices = @transform_4, window_bounds = array<i64: 1, 96>}, {pipeline_mode = #tpu.pipeline_mode<synchronous>, transform_indices = @transform_5, window_bounds = array<i64: 32, 32>}, {pipeline_mode = #tpu.pipeline_mode<synchronous>, transform_indices = @transform_6, window_bounds = array<i64: 1, 32>}, {pipeline_mode = #tpu.pipeline_mode<synchronous>, transform_indices = @transform_7, window_bounds = array<i64: 1, 32>}, {pipeline_mode = #tpu.pipeline_mode<synchronous>, transform_indices = @transform_8, window_bounds = array<i64: 1, 32>}, {pipeline_mode = #tpu.pipeline_mode<synchronous>, transform_indices = @transform_9, window_bounds = array<i64: 32, 128>}, {pipeline_mode = #tpu.pipeline_mode<synchronous>, transform_indices = @transform_10, window_bounds = array<i64: 1, 128>}, {pipeline_mode = #tpu.pipeline_mode<synchronous>, transform_indices = @transform_11, window_bounds = array<i64: 128, 32>}, {pipeline_mode = #tpu.pipeline_mode<synchronous>, transform_indices = @transform_12, window_bounds = array<i64: 1, 32>}, {transform_indices = @transform_13, window_bounds = array<i64: 16, 32>}]} {
    %c0 = arith.constant 0 : index
    %c0_0 = arith.constant 0 : index
    %0 = vector.load %arg1[%c0, %c0_0] : memref<16x32xf32, #tpu.memory_space<vmem>>, vector<16x32xf32>
    %c0_1 = arith.constant 0 : index
    %c0_2 = arith.constant 0 : index
    %1 = vector.load %arg2[%c0_1, %c0_2] : memref<1x32xf32, #tpu.memory_space<vmem>>, vector<1x32xf32>
    %c0_3 = arith.constant 0 : index
    %c0_4 = arith.constant 0 : index
    %2 = vector.load %arg3[%c0_3, %c0_4] : memref<1x32xf32, #tpu.memory_space<vmem>>, vector<1x32xf32>
    %cst = arith.constant dense<0.000000e+00> : vector<16xf32>
    %3 = vector.multi_reduction <add>, %0, %cst [1] : vector<16x32xf32> to vector<16xf32>
    %4 = vector.shape_cast %3 : vector<16xf32> to vector<16x1xf32>
    %cst_5 = arith.constant 3.200000e+01 : f32
    %5 = vector.broadcast %cst_5 : f32 to vector<16x1xf32>
    %6 = arith.divf %4, %5 : vector<16x1xf32>
    %7 = vector.broadcast %6 : vector<16x1xf32> to vector<16x32xf32>
    %8 = arith.subf %0, %7 : vector<16x32xf32>
    %9 = vector.broadcast %6 : vector<16x1xf32> to vector<16x32xf32>
    %10 = arith.subf %0, %9 : vector<16x32xf32>
    %11 = arith.mulf %8, %10 : vector<16x32xf32>
    %cst_6 = arith.constant dense<0.000000e+00> : vector<16xf32>
    %12 = vector.multi_reduction <add>, %11, %cst_6 [1] : vector<16x32xf32> to vector<16xf32>
    %13 = vector.shape_cast %12 : vector<16xf32> to vector<16x1xf32>
    %cst_7 = arith.constant 3.200000e+01 : f32
    %14 = vector.broadcast %cst_7 : f32 to vector<16x1xf32>
    %15 = arith.divf %13, %14 : vector<16x1xf32>
    %16 = vector.broadcast %6 : vector<16x1xf32> to vector<16x32xf32>
    %17 = arith.subf %0, %16 : vector<16x32xf32>
    %cst_8 = arith.constant 9.99999974E-6 : f32
    %18 = vector.broadcast %cst_8 : f32 to vector<16x1xf32>
    %19 = arith.addf %15, %18 : vector<16x1xf32>
    %20 = math.rsqrt %19 : vector<16x1xf32>
    %21 = vector.broadcast %20 : vector<16x1xf32> to vector<16x32xf32>
    %22 = arith.mulf %17, %21 : vector<16x32xf32>
    %23 = vector.broadcast %1 : vector<1x32xf32> to vector<16x32xf32>
    %24 = arith.mulf %22, %23 : vector<16x32xf32>
    %25 = vector.broadcast %2 : vector<1x32xf32> to vector<16x32xf32>
    %26 = arith.addf %24, %25 : vector<16x32xf32>
    %27 = arith.truncf %26 : vector<16x32xf32> to vector<16x32xbf16>
    %c0_9 = arith.constant 0 : index
    %c0_10 = arith.constant 0 : index
    %28 = vector.load %arg4[%c0_9, %c0_10] : memref<32x96xbf16, #tpu.memory_space<vmem>>, vector<32x96xbf16>
    %cst_11 = arith.constant dense<0.000000e+00> : vector<16x96xf32>
    %29 = tpu.matmul %27, %28, %cst_11 {dimension_numbers = #tpu.dot_dimension_numbers<[1], [0], [0], [1], [0, 0, 1, 1], [], []>} : vector<16x32xbf16>, vector<32x96xbf16>, vector<16x96xf32> -> vector<16x96xf32>
    %c0_12 = arith.constant 0 : index
    %c0_13 = arith.constant 0 : index
    %30 = vector.load %arg5[%c0_12, %c0_13] : memref<1x96xf32, #tpu.memory_space<vmem>>, vector<1x96xf32>
    %31 = vector.broadcast %30 : vector<1x96xf32> to vector<16x96xf32>
    %32 = arith.addf %29, %31 : vector<16x96xf32>
    %33 = vector.shape_cast %32 : vector<16x96xf32> to vector<2x8x96xf32>
    %34 = vector.extract_strided_slice %33 {offsets = [0, 0, 0], sizes = [2, 8, 8], strides = [1, 1, 1]} : vector<2x8x96xf32> to vector<2x8x8xf32>
    %35 = vector.extract_strided_slice %33 {offsets = [0, 0, 8], sizes = [2, 8, 8], strides = [1, 1, 1]} : vector<2x8x96xf32> to vector<2x8x8xf32>
    %36 = vector.extract_strided_slice %33 {offsets = [0, 0, 16], sizes = [2, 8, 8], strides = [1, 1, 1]} : vector<2x8x96xf32> to vector<2x8x8xf32>
    %37 = vector.extract_strided_slice %33 {offsets = [0, 0, 24], sizes = [2, 8, 8], strides = [1, 1, 1]} : vector<2x8x96xf32> to vector<2x8x8xf32>
    %38 = vector.shape_cast %34 : vector<2x8x8xf32> to vector<2x1x8x8xf32>
    %39 = vector.shape_cast %35 : vector<2x8x8xf32> to vector<2x1x8x8xf32>
    %40 = vector.shape_cast %36 : vector<2x8x8xf32> to vector<2x1x8x8xf32>
    %41 = vector.shape_cast %37 : vector<2x8x8xf32> to vector<2x1x8x8xf32>
    %42 = tpu.concatenate %38, %39, %40, %41 in 1 : vector<2x1x8x8xf32>, vector<2x1x8x8xf32>, vector<2x1x8x8xf32>, vector<2x1x8x8xf32> -> vector<2x4x8x8xf32>
    %43 = vector.shape_cast %42 : vector<2x4x8x8xf32> to vector<8x8x8xf32>
    %44 = vector.extract_strided_slice %33 {offsets = [0, 0, 32], sizes = [2, 8, 8], strides = [1, 1, 1]} : vector<2x8x96xf32> to vector<2x8x8xf32>
    %45 = vector.extract_strided_slice %33 {offsets = [0, 0, 40], sizes = [2, 8, 8], strides = [1, 1, 1]} : vector<2x8x96xf32> to vector<2x8x8xf32>
    %46 = vector.extract_strided_slice %33 {offsets = [0, 0, 48], sizes = [2, 8, 8], strides = [1, 1, 1]} : vector<2x8x96xf32> to vector<2x8x8xf32>
    %47 = vector.extract_strided_slice %33 {offsets = [0, 0, 56], sizes = [2, 8, 8], strides = [1, 1, 1]} : vector<2x8x96xf32> to vector<2x8x8xf32>
    %48 = vector.shape_cast %44 : vector<2x8x8xf32> to vector<2x1x8x8xf32>
    %49 = vector.shape_cast %45 : vector<2x8x8xf32> to vector<2x1x8x8xf32>
    %50 = vector.shape_cast %46 : vector<2x8x8xf32> to vector<2x1x8x8xf32>
    %51 = vector.shape_cast %47 : vector<2x8x8xf32> to vector<2x1x8x8xf32>
    %52 = tpu.concatenate %48, %49, %50, %51 in 1 : vector<2x1x8x8xf32>, vector<2x1x8x8xf32>, vector<2x1x8x8xf32>, vector<2x1x8x8xf32> -> vector<2x4x8x8xf32>
    %53 = vector.shape_cast %52 : vector<2x4x8x8xf32> to vector<8x8x8xf32>
    %54 = vector.extract_strided_slice %33 {offsets = [0, 0, 64], sizes = [2, 8, 8], strides = [1, 1, 1]} : vector<2x8x96xf32> to vector<2x8x8xf32>
    %55 = vector.extract_strided_slice %33 {offsets = [0, 0, 72], sizes = [2, 8, 8], strides = [1, 1, 1]} : vector<2x8x96xf32> to vector<2x8x8xf32>
    %56 = vector.extract_strided_slice %33 {offsets = [0, 0, 80], sizes = [2, 8, 8], strides = [1, 1, 1]} : vector<2x8x96xf32> to vector<2x8x8xf32>
    %57 = vector.extract_strided_slice %33 {offsets = [0, 0, 88], sizes = [2, 8, 8], strides = [1, 1, 1]} : vector<2x8x96xf32> to vector<2x8x8xf32>
    %58 = vector.shape_cast %54 : vector<2x8x8xf32> to vector<2x1x8x8xf32>
    %59 = vector.shape_cast %55 : vector<2x8x8xf32> to vector<2x1x8x8xf32>
    %60 = vector.shape_cast %56 : vector<2x8x8xf32> to vector<2x1x8x8xf32>
    %61 = vector.shape_cast %57 : vector<2x8x8xf32> to vector<2x1x8x8xf32>
    %62 = tpu.concatenate %58, %59, %60, %61 in 1 : vector<2x1x8x8xf32>, vector<2x1x8x8xf32>, vector<2x1x8x8xf32>, vector<2x1x8x8xf32> -> vector<2x4x8x8xf32>
    %63 = vector.shape_cast %62 : vector<2x4x8x8xf32> to vector<8x8x8xf32>
    %64 = tpu.iota {dimensions = array<i32: 0>} : vector<8x8xi32>
    %65 = tpu.iota {dimensions = array<i32: 1>} : vector<8x8xi32>
    %66 = arith.cmpi sle, %65, %64 : vector<8x8xi32>
    %67 = vector.shape_cast %66 : vector<8x8xi1> to vector<1x8x8xi1>
    %68 = arith.truncf %43 : vector<8x8x8xf32> to vector<8x8x8xbf16>
    %69 = arith.truncf %53 : vector<8x8x8xf32> to vector<8x8x8xbf16>
    "tpu.trace_start"() <{level = 10 : i32, message = "gqd,gkd->gqk"}> : () -> ()
    %cst_14 = arith.constant dense<0.000000e+00> : vector<8x8x8xf32>
    %70 = tpu.matmul %68, %69, %cst_14 {dimension_numbers = #tpu.dot_dimension_numbers<[2], [2], [1], [1], [0, 0, 0, 1, 1, 1], [0], [0]>} : vector<8x8x8xbf16>, vector<8x8x8xbf16>, vector<8x8x8xf32> -> vector<8x8x8xf32>
    %cst_15 = arith.constant -1.000000e+30 : f32
    "tpu.trace_stop"() : () -> ()
    %71 = vector.shape_cast %67 : vector<1x8x8xi1> to vector<1x8x8xi1>
    %72 = vector.broadcast %71 : vector<1x8x8xi1> to vector<8x8x8xi1>
    %73 = vector.broadcast %cst_15 : f32 to vector<8x8x8xf32>
    %74 = arith.select %72, %70, %73 : vector<8x8x8xi1>, vector<8x8x8xf32>
    %cst_16 = arith.constant dense<0xFF800000> : vector<8x8xf32>
    %75 = vector.multi_reduction <maximumf>, %74, %cst_16 [2] : vector<8x8x8xf32> to vector<8x8xf32>
    %76 = vector.shape_cast %75 : vector<8x8xf32> to vector<8x8x1xf32>
    %77 = vector.broadcast %76 : vector<8x8x1xf32> to vector<8x8x8xf32>
    %78 = arith.subf %74, %77 : vector<8x8x8xf32>
    %79 = math.exp %78 : vector<8x8x8xf32>
    %cst_17 = arith.constant dense<0.000000e+00> : vector<8x8xf32>
    %80 = vector.multi_reduction <add>, %79, %cst_17 [2] : vector<8x8x8xf32> to vector<8x8xf32>
    %81 = vector.shape_cast %80 : vector<8x8xf32> to vector<8x8x1xf32>
    %82 = tpu.reciprocal %81 {approx = true} : vector<8x8x1xf32> -> vector<8x8x1xf32>
    %83 = vector.broadcast %82 : vector<8x8x1xf32> to vector<8x8x8xf32>
    %84 = arith.mulf %79, %83 : vector<8x8x8xf32>
    %85 = arith.truncf %84 : vector<8x8x8xf32> to vector<8x8x8xbf16>
    %86 = arith.truncf %63 : vector<8x8x8xf32> to vector<8x8x8xbf16>
    "tpu.trace_start"() <{level = 10 : i32, message = "gqk,gkd->gqd"}> : () -> ()
    %cst_18 = arith.constant dense<0.000000e+00> : vector<8x8x8xf32>
    %87 = tpu.matmul %85, %86, %cst_18 {dimension_numbers = #tpu.dot_dimension_numbers<[2], [1], [1], [2], [0, 0, 0, 1, 1, 2], [0], [0]>} : vector<8x8x8xbf16>, vector<8x8x8xbf16>, vector<8x8x8xf32> -> vector<8x8x8xf32>
    "tpu.trace_stop"() : () -> ()
    %88 = vector.shape_cast %87 : vector<8x8x8xf32> to vector<2x4x8x8xf32>
    %89 = vector.extract_strided_slice %88 {offsets = [0, 0, 0, 0], sizes = [2, 1, 8, 8], strides = [1, 1, 1, 1]} : vector<2x4x8x8xf32> to vector<2x1x8x8xf32>
    %90 = vector.shape_cast %89 : vector<2x1x8x8xf32> to vector<2x8x8xf32>
    %91 = vector.extract_strided_slice %88 {offsets = [0, 1, 0, 0], sizes = [2, 1, 8, 8], strides = [1, 1, 1, 1]} : vector<2x4x8x8xf32> to vector<2x1x8x8xf32>
    %92 = vector.shape_cast %91 : vector<2x1x8x8xf32> to vector<2x8x8xf32>
    %93 = vector.extract_strided_slice %88 {offsets = [0, 2, 0, 0], sizes = [2, 1, 8, 8], strides = [1, 1, 1, 1]} : vector<2x4x8x8xf32> to vector<2x1x8x8xf32>
    %94 = vector.shape_cast %93 : vector<2x1x8x8xf32> to vector<2x8x8xf32>
    %95 = vector.extract_strided_slice %88 {offsets = [0, 3, 0, 0], sizes = [2, 1, 8, 8], strides = [1, 1, 1, 1]} : vector<2x4x8x8xf32> to vector<2x1x8x8xf32>
    %96 = vector.shape_cast %95 : vector<2x1x8x8xf32> to vector<2x8x8xf32>
    %97 = tpu.concatenate %90, %92, %94, %96 in 2 : vector<2x8x8xf32>, vector<2x8x8xf32>, vector<2x8x8xf32>, vector<2x8x8xf32> -> vector<2x8x32xf32>
    %98 = vector.shape_cast %97 : vector<2x8x32xf32> to vector<16x32xf32>
    %99 = arith.truncf %98 : vector<16x32xf32> to vector<16x32xbf16>
    %c0_19 = arith.constant 0 : index
    %c0_20 = arith.constant 0 : index
    %100 = vector.load %arg6[%c0_19, %c0_20] : memref<32x32xbf16, #tpu.memory_space<vmem>>, vector<32x32xbf16>
    %cst_21 = arith.constant dense<0.000000e+00> : vector<16x32xf32>
    %101 = tpu.matmul %99, %100, %cst_21 {dimension_numbers = #tpu.dot_dimension_numbers<[1], [0], [0], [1], [0, 0, 1, 1], [], []>} : vector<16x32xbf16>, vector<32x32xbf16>, vector<16x32xf32> -> vector<16x32xf32>
    %c0_22 = arith.constant 0 : index
    %c0_23 = arith.constant 0 : index
    %102 = vector.load %arg7[%c0_22, %c0_23] : memref<1x32xf32, #tpu.memory_space<vmem>>, vector<1x32xf32>
    %103 = vector.broadcast %102 : vector<1x32xf32> to vector<16x32xf32>
    %104 = arith.addf %101, %103 : vector<16x32xf32>
    %105 = arith.addf %0, %104 : vector<16x32xf32>
    %c0_24 = arith.constant 0 : index
    %c0_25 = arith.constant 0 : index
    %106 = vector.load %arg8[%c0_24, %c0_25] : memref<1x32xf32, #tpu.memory_space<vmem>>, vector<1x32xf32>
    %c0_26 = arith.constant 0 : index
    %c0_27 = arith.constant 0 : index
    %107 = vector.load %arg9[%c0_26, %c0_27] : memref<1x32xf32, #tpu.memory_space<vmem>>, vector<1x32xf32>
    %cst_28 = arith.constant dense<0.000000e+00> : vector<16xf32>
    %108 = vector.multi_reduction <add>, %105, %cst_28 [1] : vector<16x32xf32> to vector<16xf32>
    %109 = vector.shape_cast %108 : vector<16xf32> to vector<16x1xf32>
    %cst_29 = arith.constant 3.200000e+01 : f32
    %110 = vector.broadcast %cst_29 : f32 to vector<16x1xf32>
    %111 = arith.divf %109, %110 : vector<16x1xf32>
    %112 = vector.broadcast %111 : vector<16x1xf32> to vector<16x32xf32>
    %113 = arith.subf %105, %112 : vector<16x32xf32>
    %114 = vector.broadcast %111 : vector<16x1xf32> to vector<16x32xf32>
    %115 = arith.subf %105, %114 : vector<16x32xf32>
    %116 = arith.mulf %113, %115 : vector<16x32xf32>
    %cst_30 = arith.constant dense<0.000000e+00> : vector<16xf32>
    %117 = vector.multi_reduction <add>, %116, %cst_30 [1] : vector<16x32xf32> to vector<16xf32>
    %118 = vector.shape_cast %117 : vector<16xf32> to vector<16x1xf32>
    %cst_31 = arith.constant 3.200000e+01 : f32
    %119 = vector.broadcast %cst_31 : f32 to vector<16x1xf32>
    %120 = arith.divf %118, %119 : vector<16x1xf32>
    %121 = vector.broadcast %111 : vector<16x1xf32> to vector<16x32xf32>
    %122 = arith.subf %105, %121 : vector<16x32xf32>
    %cst_32 = arith.constant 9.99999974E-6 : f32
    %123 = vector.broadcast %cst_32 : f32 to vector<16x1xf32>
    %124 = arith.addf %120, %123 : vector<16x1xf32>
    %125 = math.rsqrt %124 : vector<16x1xf32>
    %126 = vector.broadcast %125 : vector<16x1xf32> to vector<16x32xf32>
    %127 = arith.mulf %122, %126 : vector<16x32xf32>
    %128 = vector.broadcast %106 : vector<1x32xf32> to vector<16x32xf32>
    %129 = arith.mulf %127, %128 : vector<16x32xf32>
    %130 = vector.broadcast %107 : vector<1x32xf32> to vector<16x32xf32>
    %131 = arith.addf %129, %130 : vector<16x32xf32>
    %132 = arith.truncf %131 : vector<16x32xf32> to vector<16x32xbf16>
    %c0_33 = arith.constant 0 : index
    %c0_34 = arith.constant 0 : index
    %133 = vector.load %arg10[%c0_33, %c0_34] : memref<32x128xbf16, #tpu.memory_space<vmem>>, vector<32x128xbf16>
    %cst_35 = arith.constant dense<0.000000e+00> : vector<16x128xf32>
    %134 = tpu.matmul %132, %133, %cst_35 {dimension_numbers = #tpu.dot_dimension_numbers<[1], [0], [0], [1], [0, 0, 1, 1], [], []>} : vector<16x32xbf16>, vector<32x128xbf16>, vector<16x128xf32> -> vector<16x128xf32>
    %c0_36 = arith.constant 0 : index
    %c0_37 = arith.constant 0 : index
    %135 = vector.load %arg11[%c0_36, %c0_37] : memref<1x128xf32, #tpu.memory_space<vmem>>, vector<1x128xf32>
    %136 = vector.broadcast %135 : vector<1x128xf32> to vector<16x128xf32>
    %137 = arith.addf %134, %136 : vector<16x128xf32>
    %cst_38 = arith.constant 5.000000e-01 : f32
    %138 = vector.broadcast %cst_38 : f32 to vector<16x128xf32>
    %139 = arith.mulf %138, %137 : vector<16x128xf32>
    %cst_39 = arith.constant 4.471500e-02 : f32
    %140 = vector.broadcast %cst_39 : f32 to vector<16x128xf32>
    %141 = arith.mulf %140, %137 : vector<16x128xf32>
    %142 = arith.mulf %141, %137 : vector<16x128xf32>
    %143 = arith.mulf %142, %137 : vector<16x128xf32>
    %144 = arith.addf %137, %143 : vector<16x128xf32>
    %cst_40 = arith.constant 0.797884583 : f32
    %145 = vector.broadcast %cst_40 : f32 to vector<16x128xf32>
    %146 = arith.mulf %145, %144 : vector<16x128xf32>
    %147 = math.tanh %146 : vector<16x128xf32>
    %cst_41 = arith.constant 1.000000e+00 : f32
    %148 = vector.broadcast %cst_41 : f32 to vector<16x128xf32>
    %149 = arith.addf %148, %147 : vector<16x128xf32>
    %150 = arith.mulf %139, %149 : vector<16x128xf32>
    %151 = arith.truncf %150 : vector<16x128xf32> to vector<16x128xbf16>
    %c0_42 = arith.constant 0 : index
    %c0_43 = arith.constant 0 : index
    %152 = vector.load %arg12[%c0_42, %c0_43] : memref<128x32xbf16, #tpu.memory_space<vmem>>, vector<128x32xbf16>
    %cst_44 = arith.constant dense<0.000000e+00> : vector<16x32xf32>
    %153 = tpu.matmul %151, %152, %cst_44 {dimension_numbers = #tpu.dot_dimension_numbers<[1], [0], [0], [1], [0, 0, 1, 1], [], []>} : vector<16x128xbf16>, vector<128x32xbf16>, vector<16x32xf32> -> vector<16x32xf32>
    %c0_45 = arith.constant 0 : index
    %c0_46 = arith.constant 0 : index
    %154 = vector.load %arg13[%c0_45, %c0_46] : memref<1x32xf32, #tpu.memory_space<vmem>>, vector<1x32xf32>
    %155 = vector.broadcast %154 : vector<1x32xf32> to vector<16x32xf32>
    %156 = arith.addf %153, %155 : vector<16x32xf32>
    %157 = arith.addf %105, %156 : vector<16x32xf32>
    %c0_47 = arith.constant 0 : index
    %c0_48 = arith.constant 0 : index
    %158 = vector.load %arg14[%c0_47, %c0_48] : memref<16x32xf32, #tpu.memory_space<vmem>>, vector<16x32xf32>
    tpu.vector_store %arg14[%c0_47, %c0_48], %157 {strides = array<i32>} : memref<16x32xf32, #tpu.memory_space<vmem>>, vector<16x32xf32>,
    return
  }
  func.func @transform_0(%arg0: i32) -> (i32, i32) {
    %c0_i32 = arith.constant 0 : i32
    %c0_i32_0 = arith.constant 0 : i32
    return %arg0, %c0_i32 : i32, i32
  }
  func.func @transform_1(%arg0: i32) -> (i32, i32) {
    %c0_i32 = arith.constant 0 : i32
    %c0_i32_0 = arith.constant 0 : i32
    %c0_i32_1 = arith.constant 0 : i32
    return %c0_i32, %c0_i32_0 : i32, i32
  }
  func.func @transform_2(%arg0: i32) -> (i32, i32) {
    %c0_i32 = arith.constant 0 : i32
    %c0_i32_0 = arith.constant 0 : i32
    %c0_i32_1 = arith.constant 0 : i32
    return %c0_i32, %c0_i32_0 : i32, i32
  }
  func.func @transform_3(%arg0: i32) -> (i32, i32) {
    %c0_i32 = arith.constant 0 : i32
    %c0_i32_0 = arith.constant 0 : i32
    %c0_i32_1 = arith.constant 0 : i32
    return %c0_i32, %c0_i32_0 : i32, i32
  }
  func.func @transform_4(%arg0: i32) -> (i32, i32) {
    %c0_i32 = arith.constant 0 : i32
    %c0_i32_0 = arith.constant 0 : i32
    %c0_i32_1 = arith.constant 0 : i32
    return %c0_i32, %c0_i32_0 : i32, i32
  }
  func.func @transform_5(%arg0: i32) -> (i32, i32) {
    %c0_i32 = arith.constant 0 : i32
    %c0_i32_0 = arith.constant 0 : i32
    %c0_i32_1 = arith.constant 0 : i32
    return %c0_i32, %c0_i32_0 : i32, i32
  }
  func.func @transform_6(%arg0: i32) -> (i32, i32) {
    %c0_i32 = arith.constant 0 : i32
    %c0_i32_0 = arith.constant 0 : i32
    %c0_i32_1 = arith.constant 0 : i32
    return %c0_i32, %c0_i32_0 : i32, i32
  }
  func.func @transform_7(%arg0: i32) -> (i32, i32) {
    %c0_i32 = arith.constant 0 : i32
    %c0_i32_0 = arith.constant 0 : i32
    %c0_i32_1 = arith.constant 0 : i32
    return %c0_i32, %c0_i32_0 : i32, i32
  }
  func.func @transform_8(%arg0: i32) -> (i32, i32) {
    %c0_i32 = arith.constant 0 : i32
    %c0_i32_0 = arith.constant 0 : i32
    %c0_i32_1 = arith.constant 0 : i32
    return %c0_i32, %c0_i32_0 : i32, i32
  }
  func.func @transform_9(%arg0: i32) -> (i32, i32) {
    %c0_i32 = arith.constant 0 : i32
    %c0_i32_0 = arith.constant 0 : i32
    %c0_i32_1 = arith.constant 0 : i32
    return %c0_i32, %c0_i32_0 : i32, i32
  }
  func.func @transform_10(%arg0: i32) -> (i32, i32) {
    %c0_i32 = arith.constant 0 : i32
    %c0_i32_0 = arith.constant 0 : i32
    %c0_i32_1 = arith.constant 0 : i32
    return %c0_i32, %c0_i32_0 : i32, i32
  }
  func.func @transform_11(%arg0: i32) -> (i32, i32) {
    %c0_i32 = arith.constant 0 : i32
    %c0_i32_0 = arith.constant 0 : i32
    %c0_i32_1 = arith.constant 0 : i32
    return %c0_i32, %c0_i32_0 : i32, i32
  }
  func.func @transform_12(%arg0: i32) -> (i32, i32) {
    %c0_i32 = arith.constant 0 : i32
    %c0_i32_0 = arith.constant 0 : i32
    %c0_i32_1 = arith.constant 0 : i32
    return %c0_i32, %c0_i32_0 : i32, i32
  }
  func.func @transform_13(%arg0: i32) -> (i32, i32) {
    %c0_i32 = arith.constant 0 : i32
    %c0_i32_0 = arith.constant 0 : i32
    return %arg0, %c0_i32 : i32, i32
  }
}

module attributes {stable_mosaic.version = 11 : i64} {
  func.func @transformer_block_kernel(%arg0: i32, %arg1: memref<16x32xf32, #tpu.memory_space<vmem>>, %arg2: memref<1x32xf32, #tpu.memory_space<vmem>>, %arg3: memref<1x32xf32, #tpu.memory_space<vmem>>, %arg4: memref<32x96xbf16, #tpu.memory_space<vmem>>, %arg5: memref<1x96xf32, #tpu.memory_space<vmem>>, %arg6: memref<32x32xbf16, #tpu.memory_space<vmem>>, %arg7: memref<1x32xf32, #tpu.memory_space<vmem>>, %arg8: memref<1x32xf32, #tpu.memory_space<vmem>>, %arg9: memref<1x32xf32, #tpu.memory_space<vmem>>, %arg10: memref<32x128xbf16, #tpu.memory_space<vmem>>, %arg11: memref<1x128xf32, #tpu.memory_space<vmem>>, %arg12: memref<128x32xbf16, #tpu.memory_space<vmem>>, %arg13: memref<1x32xf32, #tpu.memory_space<vmem>>, %arg14: memref<16x32xf32, #tpu.memory_space<vmem>>) attributes {dimension_semantics = [#tpu.dimension_semantics<parallel>], iteration_bounds = array<i64: 1>, scalar_prefetch = 0 : i64, scratch_operands = 0 : i64, tpu.core_type = #tpu.core_type<tc>, window_params = [{transform_indices = @transform_0, window_bounds = array<i64: 16, 32>}, {pipeline_mode = #tpu.pipeline_mode<synchronous>, transform_indices = @transform_1, window_bounds = array<i64: 1, 32>}, {pipeline_mode = #tpu.pipeline_mode<synchronous>, transform_indices = @transform_2, window_bounds = array<i64: 1, 32>}, {pipeline_mode = #tpu.pipeline_mode<synchronous>, transform_indices = @transform_3, window_bounds = array<i64: 32, 96>}, {pipeline_mode = #tpu.pipeline_mode<synchronous>, transform_indices = @transform_4, window_bounds = array<i64: 1, 96>}, {pipeline_mode = #tpu.pipeline_mode<synchronous>, transform_indices = @transform_5, window_bounds = array<i64: 32, 32>}, {pipeline_mode = #tpu.pipeline_mode<synchronous>, transform_indices = @transform_6, window_bounds = array<i64: 1, 32>}, {pipeline_mode = #tpu.pipeline_mode<synchronous>, transform_indices = @transform_7, window_bounds = array<i64: 1, 32>}, {pipeline_mode = #tpu.pipeline_mode<synchronous>, transform_indices = @transform_8, window_bounds = array<i64: 1, 32>}, {pipeline_mode = #tpu.pipeline_mode<synchronous>, transform_indices = @transform_9, window_bounds = array<i64: 32, 128>}, {pipeline_mode = #tpu.pipeline_mode<synchronous>, transform_indices = @transform_10, window_bounds = array<i64: 1, 128>}, {pipeline_mode = #tpu.pipeline_mode<synchronous>, transform_indices = @transform_11, window_bounds = array<i64: 128, 32>}, {pipeline_mode = #tpu.pipeline_mode<synchronous>, transform_indices = @transform_12, window_bounds = array<i64: 1, 32>}, {transform_indices = @transform_13, window_bounds = array<i64: 16, 32>}]} {
    %c0 = arith.constant 0 : index
    %c0_0 = arith.constant 0 : index
    %0 = vector.load %arg1[%c0, %c0_0] : memref<16x32xf32, #tpu.memory_space<vmem>>, vector<16x32xf32>
    %c0_1 = arith.constant 0 : index
    %c0_2 = arith.constant 0 : index
    %1 = vector.load %arg2[%c0_1, %c0_2] : memref<1x32xf32, #tpu.memory_space<vmem>>, vector<1x32xf32>
    %c0_3 = arith.constant 0 : index
    %c0_4 = arith.constant 0 : index
    %2 = vector.load %arg3[%c0_3, %c0_4] : memref<1x32xf32, #tpu.memory_space<vmem>>, vector<1x32xf32>
    %cst = arith.constant dense<0.000000e+00> : vector<16xf32>
    %3 = vector.multi_reduction <add>, %0, %cst [1] : vector<16x32xf32> to vector<16xf32>
    %4 = vector.shape_cast %3 : vector<16xf32> to vector<16x1xf32>
    %cst_5 = arith.constant 3.200000e+01 : f32
    %5 = vector.broadcast %cst_5 : f32 to vector<16x1xf32>
    %6 = arith.divf %4, %5 : vector<16x1xf32>
    %7 = vector.broadcast %6 : vector<16x1xf32> to vector<16x32xf32>
    %8 = arith.subf %0, %7 : vector<16x32xf32>
    %9 = vector.broadcast %6 : vector<16x1xf32> to vector<16x32xf32>
    %10 = arith.subf %0, %9 : vector<16x32xf32>
    %11 = arith.mulf %8, %10 : vector<16x32xf32>
    %cst_6 = arith.constant dense<0.000000e+00> : vector<16xf32>
    %12 = vector.multi_reduction <add>, %11, %cst_6 [1] : vector<16x32xf32> to vector<16xf32>
    %13 = vector.shape_cast %12 : vector<16xf32> to vector<16x1xf32>
    %cst_7 = arith.constant 3.200000e+01 : f32
    %14 = vector.broadcast %cst_7 : f32 to vector<16x1xf32>
    %15 = arith.divf %13, %14 : vector<16x1xf32>
    %16 = vector.broadcast %6 : vector<16x1xf32> to vector<16x32xf32>
    %17 = arith.subf %0, %16 : vector<16x32xf32>
    %cst_8 = arith.constant 9.99999974E-6 : f32
    %18 = vector.broadcast %cst_8 : f32 to vector<16x1xf32>
    %19 = arith.addf %15, %18 : vector<16x1xf32>
    %20 = math.rsqrt %19 : vector<16x1xf32>
    %21 = vector.broadcast %20 : vector<16x1xf32> to vector<16x32xf32>
    %22 = arith.mulf %17, %21 : vector<16x32xf32>
    %23 = vector.broadcast %1 : vector<1x32xf32> to vector<16x32xf32>
    %24 = arith.mulf %22, %23 : vector<16x32xf32>
    %25 = vector.broadcast %2 : vector<1x32xf32> to vector<16x32xf32>
    %26 = arith.addf %24, %25 : vector<16x32xf32>
    %27 = arith.truncf %26 : vector<16x32xf32> to vector<16x32xbf16>
    %c0_9 = arith.constant 0 : index
    %c0_10 = arith.constant 0 : index
    %28 = vector.load %arg4[%c0_9, %c0_10] : memref<32x96xbf16, #tpu.memory_space<vmem>>, vector<32x96xbf16>
    %cst_11 = arith.constant dense<0.000000e+00> : vector<16x96xf32>
    %29 = tpu.matmul %27, %28, %cst_11 {dimension_numbers = #tpu.dot_dimension_numbers<[1], [0], [0], [1], [0, 0, 1, 1], [], []>} : vector<16x32xbf16>, vector<32x96xbf16>, vector<16x96xf32> -> vector<16x96xf32>
    %c0_12 = arith.constant 0 : index
    %c0_13 = arith.constant 0 : index
    %30 = vector.load %arg5[%c0_12, %c0_13] : memref<1x96xf32, #tpu.memory_space<vmem>>, vector<1x96xf32>
    %31 = vector.broadcast %30 : vector<1x96xf32> to vector<16x96xf32>
    %32 = arith.addf %29, %31 : vector<16x96xf32>
    %33 = vector.shape_cast %32 : vector<16x96xf32> to vector<2x8x96xf32>
    %34 = vector.extract_strided_slice %33 {offsets = [0, 0, 0], sizes = [2, 8, 8], strides = [1, 1, 1]} : vector<2x8x96xf32> to vector<2x8x8xf32>
    %35 = vector.extract_strided_slice %33 {offsets = [0, 0, 8], sizes = [2, 8, 8], strides = [1, 1, 1]} : vector<2x8x96xf32> to vector<2x8x8xf32>
    %36 = vector.extract_strided_slice %33 {offsets = [0, 0, 16], sizes = [2, 8, 8], strides = [1, 1, 1]} : vector<2x8x96xf32> to vector<2x8x8xf32>
    %37 = vector.extract_strided_slice %33 {offsets = [0, 0, 24], sizes = [2, 8, 8], strides = [1, 1, 1]} : vector<2x8x96xf32> to vector<2x8x8xf32>
    %38 = vector.shape_cast %34 : vector<2x8x8xf32> to vector<2x1x8x8xf32>
    %39 = vector.shape_cast %35 : vector<2x8x8xf32> to vector<2x1x8x8xf32>
    %40 = vector.shape_cast %36 : vector<2x8x8xf32> to vector<2x1x8x8xf32>
    %41 = vector.shape_cast %37 : vector<2x8x8xf32> to vector<2x1x8x8xf32>
    %42 = tpu.concatenate %38, %39, %40, %41 in 1 : vector<2x1x8x8xf32>, vector<2x1x8x8xf32>, vector<2x1x8x8xf32>, vector<2x1x8x8xf32> -> vector<2x4x8x8xf32>
    %43 = vector.shape_cast %42 : vector<2x4x8x8xf32> to vector<8x8x8xf32>
    %44 = vector.extract_strided_slice %33 {offsets = [0, 0, 32], sizes = [2, 8, 8], strides = [1, 1, 1]} : vector<2x8x96xf32> to vector<2x8x8xf32>
    %45 = vector.extract_strided_slice %33 {offsets = [0, 0, 40], sizes = [2, 8, 8], strides = [1, 1, 1]} : vector<2x8x96xf32> to vector<2x8x8xf32>
    %46 = vector.extract_strided_slice %33 {offsets = [0, 0, 48], sizes = [2, 8, 8], strides = [1, 1, 1]} : vector<2x8x96xf32> to vector<2x8x8xf32>
    %47 = vector.extract_strided_slice %33 {offsets = [0, 0, 56], sizes = [2, 8, 8], strides = [1, 1, 1]} : vector<2x8x96xf32> to vector<2x8x8xf32>
    %48 = vector.shape_cast %44 : vector<2x8x8xf32> to vector<2x1x8x8xf32>
    %49 = vector.shape_cast %45 : vector<2x8x8xf32> to vector<2x1x8x8xf32>
    %50 = vector.shape_cast %46 : vector<2x8x8xf32> to vector<2x1x8x8xf32>
    %51 = vector.shape_cast %47 : vector<2x8x8xf32> to vector<2x1x8x8xf32>
    %52 = tpu.concatenate %48, %49, %50, %51 in 1 : vector<2x1x8x8xf32>, vector<2x1x8x8xf32>, vector<2x1x8x8xf32>, vector<2x1x8x8xf32> -> vector<2x4x8x8xf32>
    %53 = vector.shape_cast %52 : vector<2x4x8x8xf32> to vector<8x8x8xf32>
    %54 = vector.extract_strided_slice %33 {offsets = [0, 0, 64], sizes = [2, 8, 8], strides = [1, 1, 1]} : vector<2x8x96xf32> to vector<2x8x8xf32>
    %55 = vector.extract_strided_slice %33 {offsets = [0, 0, 72], sizes = [2, 8, 8], strides = [1, 1, 1]} : vector<2x8x96xf32> to vector<2x8x8xf32>
    %56 = vector.extract_strided_slice %33 {offsets = [0, 0, 80], sizes = [2, 8, 8], strides = [1, 1, 1]} : vector<2x8x96xf32> to vector<2x8x8xf32>
    %57 = vector.extract_strided_slice %33 {offsets = [0, 0, 88], sizes = [2, 8, 8], strides = [1, 1, 1]} : vector<2x8x96xf32> to vector<2x8x8xf32>
    %58 = vector.shape_cast %54 : vector<2x8x8xf32> to vector<2x1x8x8xf32>
    %59 = vector.shape_cast %55 : vector<2x8x8xf32> to vector<2x1x8x8xf32>
    %60 = vector.shape_cast %56 : vector<2x8x8xf32> to vector<2x1x8x8xf32>
    %61 = vector.shape_cast %57 : vector<2x8x8xf32> to vector<2x1x8x8xf32>
    %62 = tpu.concatenate %58, %59, %60, %61 in 1 : vector<2x1x8x8xf32>, vector<2x1x8x8xf32>, vector<2x1x8x8xf32>, vector<2x1x8x8xf32> -> vector<2x4x8x8xf32>
    %63 = vector.shape_cast %62 : vector<2x4x8x8xf32> to vector<8x8x8xf32>
    %64 = tpu.iota {dimensions = array<i32: 0>} : vector<8x8xi32>
    %65 = tpu.iota {dimensions = array<i32: 1>} : vector<8x8xi32>
    %66 = arith.cmpi sle, %65, %64 : vector<8x8xi32>
    %67 = vector.shape_cast %66 : vector<8x8xi1> to vector<1x8x8xi1>
    %68 = arith.truncf %43 : vector<8x8x8xf32> to vector<8x8x8xbf16>
    %69 = arith.truncf %53 : vector<8x8x8xf32> to vector<8x8x8xbf16>
    "tpu.trace_start"() <{level = 10 : i32, message = "gqd,gkd->gqk"}> : () -> ()
    %cst_14 = arith.constant dense<0.000000e+00> : vector<8x8x8xf32>
    %70 = tpu.matmul %68, %69, %cst_14 {dimension_numbers = #tpu.dot_dimension_numbers<[2], [2], [1], [1], [0, 0, 0, 1, 1, 1], [0], [0]>} : vector<8x8x8xbf16>, vector<8x8x8xbf16>, vector<8x8x8xf32> -> vector<8x8x8xf32>
    %cst_15 = arith.constant -1.000000e+30 : f32
    "tpu.trace_stop"() : () -> ()
    %71 = vector.shape_cast %67 : vector<1x8x8xi1> to vector<1x8x8xi1>
    %72 = vector.broadcast %71 : vector<1x8x8xi1> to vector<8x8x8xi1>
    %73 = vector.broadcast %cst_15 : f32 to vector<8x8x8xf32>
    %74 = arith.select %72, %70, %73 : vector<8x8x8xi1>, vector<8x8x8xf32>
    %cst_16 = arith.constant dense<0xFF800000> : vector<8x8xf32>
    %75 = vector.multi_reduction <maximumf>, %74, %cst_16 [2] : vector<8x8x8xf32> to vector<8x8xf32>
    %76 = vector.shape_cast %75 : vector<8x8xf32> to vector<8x8x1xf32>
    %77 = vector.broadcast %76 : vector<8x8x1xf32> to vector<8x8x8xf32>
    %78 = arith.subf %74, %77 : vector<8x8x8xf32>
    %79 = math.exp %78 : vector<8x8x8xf32>
    %cst_17 = arith.constant dense<0.000000e+00> : vector<8x8xf32>
    %80 = vector.multi_reduction <add>, %79, %cst_17 [2] : vector<8x8x8xf32> to vector<8x8xf32>
    %81 = vector.shape_cast %80 : vector<8x8xf32> to vector<8x8x1xf32>
    %82 = tpu.reciprocal %81 {approx = true} : vector<8x8x1xf32> -> vector<8x8x1xf32>
    %83 = vector.broadcast %82 : vector<8x8x1xf32> to vector<8x8x8xf32>
    %84 = arith.mulf %79, %83 : vector<8x8x8xf32>
    %85 = arith.truncf %84 : vector<8x8x8xf32> to vector<8x8x8xbf16>
    %86 = arith.truncf %63 : vector<8x8x8xf32> to vector<8x8x8xbf16>
    "tpu.trace_start"() <{level = 10 : i32, message = "gqk,gkd->gqd"}> : () -> ()
    %cst_18 = arith.constant dense<0.000000e+00> : vector<8x8x8xf32>
    %87 = tpu.matmul %85, %86, %cst_18 {dimension_numbers = #tpu.dot_dimension_numbers<[2], [1], [1], [2], [0, 0, 0, 1, 1, 2], [0], [0]>} : vector<8x8x8xbf16>, vector<8x8x8xbf16>, vector<8x8x8xf32> -> vector<8x8x8xf32>
    "tpu.trace_stop"() : () -> ()
    %88 = vector.shape_cast %87 : vector<8x8x8xf32> to vector<2x4x8x8xf32>
    %89 = vector.extract_strided_slice %88 {offsets = [0, 0, 0, 0], sizes = [2, 1, 8, 8], strides = [1, 1, 1, 1]} : vector<2x4x8x8xf32> to vector<2x1x8x8xf32>
    %90 = vector.shape_cast %89 : vector<2x1x8x8xf32> to vector<2x8x8xf32>
    %91 = vector.extract_strided_slice %88 {offsets = [0, 1, 0, 0], sizes = [2, 1, 8, 8], strides = [1, 1, 1, 1]} : vector<2x4x8x8xf32> to vector<2x1x8x8xf32>
    %92 = vector.shape_cast %91 : vector<2x1x8x8xf32> to vector<2x8x8xf32>
    %93 = vector.extract_strided_slice %88 {offsets = [0, 2, 0, 0], sizes = [2, 1, 8, 8], strides = [1, 1, 1, 1]} : vector<2x4x8x8xf32> to vector<2x1x8x8xf32>
    %94 = vector.shape_cast %93 : vector<2x1x8x8xf32> to vector<2x8x8xf32>
    %95 = vector.extract_strided_slice %88 {offsets = [0, 3, 0, 0], sizes = [2, 1, 8, 8], strides = [1, 1, 1, 1]} : vector<2x4x8x8xf32> to vector<2x1x8x8xf32>
    %96 = vector.shape_cast %95 : vector<2x1x8x8xf32> to vector<2x8x8xf32>
    %97 = tpu.concatenate %90, %92, %94, %96 in 2 : vector<2x8x8xf32>, vector<2x8x8xf32>, vector<2x8x8xf32>, vector<2x8x8xf32> -> vector<2x8x32xf32>
    %98 = vector.shape_cast %97 : vector<2x8x32xf32> to vector<16x32xf32>
    %99 = arith.truncf %98 : vector<16x32xf32> to vector<16x32xbf16>
    %c0_19 = arith.constant 0 : index
    %c0_20 = arith.constant 0 : index
    %100 = vector.load %arg6[%c0_19, %c0_20] : memref<32x32xbf16, #tpu.memory_space<vmem>>, vector<32x32xbf16>
    %cst_21 = arith.constant dense<0.000000e+00> : vector<16x32xf32>
    %101 = tpu.matmul %99, %100, %cst_21 {dimension_numbers = #tpu.dot_dimension_numbers<[1], [0], [0], [1], [0, 0, 1, 1], [], []>} : vector<16x32xbf16>, vector<32x32xbf16>, vector<16x32xf32> -> vector<16x32xf32>
    %c0_22 = arith.constant 0 : index
    %c0_23 = arith.constant 0 : index
    %102 = vector.load %arg7[%c0_22, %c0_23] : memref<1x32xf32, #tpu.memory_space<vmem>>, vector<1x32xf32>
    %103 = vector.broadcast %102 : vector<1x32xf32> to vector<16x32xf32>
    %104 = arith.addf %101, %103 : vector<16x32xf32>
    %105 = arith.addf %0, %104 : vector<16x32xf32>
    %c0_24 = arith.constant 0 : index
    %c0_25 = arith.constant 0 : index
    %106 = vector.load %arg8[%c0_24, %c0_25] : memref<1x32xf32, #tpu.memory_space<vmem>>, vector<1x32xf32>
    %c0_26 = arith.constant 0 : index
    %c0_27 = arith.constant 0 : index
    %107 = vector.load %arg9[%c0_26, %c0_27] : memref<1x32xf32, #tpu.memory_space<vmem>>, vector<1x32xf32>
    %cst_28 = arith.constant dense<0.000000e+00> : vector<16xf32>
    %108 = vector.multi_reduction <add>, %105, %cst_28 [1] : vector<16x32xf32> to vector<16xf32>
    %109 = vector.shape_cast %108 : vector<16xf32> to vector<16x1xf32>
    %cst_29 = arith.constant 3.200000e+01 : f32
    %110 = vector.broadcast %cst_29 : f32 to vector<16x1xf32>
    %111 = arith.divf %109, %110 : vector<16x1xf32>
    %112 = vector.broadcast %111 : vector<16x1xf32> to vector<16x32xf32>
    %113 = arith.subf %105, %112 : vector<16x32xf32>
    %114 = vector.broadcast %111 : vector<16x1xf32> to vector<16x32xf32>
    %115 = arith.subf %105, %114 : vector<16x32xf32>
    %116 = arith.mulf %113, %115 : vector<16x32xf32>
    %cst_30 = arith.constant dense<0.000000e+00> : vector<16xf32>
    %117 = vector.multi_reduction <add>, %116, %cst_30 [1] : vector<16x32xf32> to vector<16xf32>
    %118 = vector.shape_cast %117 : vector<16xf32> to vector<16x1xf32>
    %cst_31 = arith.constant 3.200000e+01 : f32
    %119 = vector.broadcast %cst_31 : f32 to vector<16x1xf32>
    %120 = arith.divf %118, %119 : vector<16x1xf32>
    %121 = vector.broadcast %111 : vector<16x1xf32> to vector<16x32xf32>
    %122 = arith.subf %105, %121 : vector<16x32xf32>
    %cst_32 = arith.constant 9.99999974E-6 : f32
    %123 = vector.broadcast %cst_32 : f32 to vector<16x1xf32>
    %124 = arith.addf %120, %123 : vector<16x1xf32>
    %125 = math.rsqrt %124 : vector<16x1xf32>
    %126 = vector.broadcast %125 : vector<16x1xf32> to vector<16x32xf32>
    %127 = arith.mulf %122, %126 : vector<16x32xf32>
    %128 = vector.broadcast %106 : vector<1x32xf32> to vector<16x32xf32>
    %129 = arith.mulf %127, %128 : vector<16x32xf32>
    %130 = vector.broadcast %107 : vector<1x32xf32> to vector<16x32xf32>
    %131 = arith.addf %129, %130 : vector<16x32xf32>
    %132 = arith.truncf %131 : vector<16x32xf32> to vector<16x32xbf16>
    %c0_33 = arith.constant 0 : index
    %c0_34 = arith.constant 0 : index
    %133 = vector.load %arg10[%c0_33, %c0_34] : memref<32x128xbf16, #tpu.memory_space<vmem>>, vector<32x128xbf16>
    %cst_35 = arith.constant dense<0.000000e+00> : vector<16x128xf32>
    %134 = tpu.matmul %132, %133, %cst_35 {dimension_numbers = #tpu.dot_dimension_numbers<[1], [0], [0], [1], [0, 0, 1, 1], [], []>} : vector<16x32xbf16>, vector<32x128xbf16>, vector<16x128xf32> -> vector<16x128xf32>
    %c0_36 = arith.constant 0 : index
    %c0_37 = arith.constant 0 : index
    %135 = vector.load %arg11[%c0_36, %c0_37] : memref<1x128xf32, #tpu.memory_space<vmem>>, vector<1x128xf32>
    %136 = vector.broadcast %135 : vector<1x128xf32> to vector<16x128xf32>
    %137 = arith.addf %134, %136 : vector<16x128xf32>
    %cst_38 = arith.constant 5.000000e-01 : f32
    %138 = vector.broadcast %cst_38 : f32 to vector<16x128xf32>
    %139 = arith.mulf %138, %137 : vector<16x128xf32>
    %cst_39 = arith.constant 4.471500e-02 : f32
    %140 = vector.broadcast %cst_39 : f32 to vector<16x128xf32>
    %141 = arith.mulf %140, %137 : vector<16x128xf32>
    %142 = arith.mulf %141, %137 : vector<16x128xf32>
    %143 = arith.mulf %142, %137 : vector<16x128xf32>
    %144 = arith.addf %137, %143 : vector<16x128xf32>
    %cst_40 = arith.constant 0.797884583 : f32
    %145 = vector.broadcast %cst_40 : f32 to vector<16x128xf32>
    %146 = arith.mulf %145, %144 : vector<16x128xf32>
    %147 = math.tanh %146 : vector<16x128xf32>
    %cst_41 = arith.constant 1.000000e+00 : f32
    %148 = vector.broadcast %cst_41 : f32 to vector<16x128xf32>
    %149 = arith.addf %148, %147 : vector<16x128xf32>
    %150 = arith.mulf %139, %149 : vector<16x128xf32>
    %151 = arith.truncf %150 : vector<16x128xf32> to vector<16x128xbf16>
    %c0_42 = arith.constant 0 : index
    %c0_43 = arith.constant 0 : index
    %152 = vector.load %arg12[%c0_42, %c0_43] : memref<128x32xbf16, #tpu.memory_space<vmem>>, vector<128x32xbf16>
    %cst_44 = arith.constant dense<0.000000e+00> : vector<16x32xf32>
    %153 = tpu.matmul %151, %152, %cst_44 {dimension_numbers = #tpu.dot_dimension_numbers<[1], [0], [0], [1], [0, 0, 1, 1], [], []>} : vector<16x128xbf16>, vector<128x32xbf16>, vector<16x32xf32> -> vector<16x32xf32>
    %c0_45 = arith.constant 0 : index
    %c0_46 = arith.constant 0 : index
    %154 = vector.load %arg13[%c0_45, %c0_46] : memref<1x32xf32, #tpu.memory_space<vmem>>, vector<1x32xf32>
    %155 = vector.broadcast %154 : vector<1x32xf32> to vector<16x32xf32>
    %156 = arith.addf %153, %155 : vector<16x32xf32>
    %157 = arith.addf %105, %156 : vector<16x32xf32>
    %c0_47 = arith.constant 0 : index
    %c0_48 = arith.constant 0 : index
    %158 = vector.load %arg14[%c0_47, %c0_48] : memref<16x32xf32, #tpu.memory_space<vmem>>, vector<16x32xf32>
    tpu.vector_store %arg14[%c0_47, %c0_48], %157 {strides = array<i32>} : memref<16x32xf32, #tpu.memory_space<vmem>>, vector<16x32xf32>,
    return
  }
  func.func @transform_0(%arg0: i32) -> (i32, i32) {
    %c0_i32 = arith.constant 0 : i32
    %c0_i32_0 = arith.constant 0 : i32
    return %arg0, %c0_i32 : i32, i32
  }
  func.func @transform_1(%arg0: i32) -> (i32, i32) {
    %c0_i32 = arith.constant 0 : i32
    %c0_i32_0 = arith.constant 0 : i32
    %c0_i32_1 = arith.constant 0 : i32
    return %c0_i32, %c0_i32_0 : i32, i32
  }
  func.func @transform_2(%arg0: i32) -> (i32, i32) {
    %c0_i32 = arith.constant 0 : i32
    %c0_i32_0 = arith.constant 0 : i32
    %c0_i32_1 = arith.constant 0 : i32
    return %c0_i32, %c0_i32_0 : i32, i32
  }
  func.func @transform_3(%arg0: i32) -> (i32, i32) {
    %c0_i32 = arith.constant 0 : i32
    %c0_i32_0 = arith.constant 0 : i32
    %c0_i32_1 = arith.constant 0 : i32
    return %c0_i32, %c0_i32_0 : i32, i32
  }
  func.func @transform_4(%arg0: i32) -> (i32, i32) {
    %c0_i32 = arith.constant 0 : i32
    %c0_i32_0 = arith.constant 0 : i32
    %c0_i32_1 = arith.constant 0 : i32
    return %c0_i32, %c0_i32_0 : i32, i32
  }
  func.func @transform_5(%arg0: i32) -> (i32, i32) {
    %c0_i32 = arith.constant 0 : i32
    %c0_i32_0 = arith.constant 0 : i32
    %c0_i32_1 = arith.constant 0 : i32
    return %c0_i32, %c0_i32_0 : i32, i32
  }
  func.func @transform_6(%arg0: i32) -> (i32, i32) {
    %c0_i32 = arith.constant 0 : i32
    %c0_i32_0 = arith.constant 0 : i32
    %c0_i32_1 = arith.constant 0 : i32
    return %c0_i32, %c0_i32_0 : i32, i32
  }
  func.func @transform_7(%arg0: i32) -> (i32, i32) {
    %c0_i32 = arith.constant 0 : i32
    %c0_i32_0 = arith.constant 0 : i32
    %c0_i32_1 = arith.constant 0 : i32
    return %c0_i32, %c0_i32_0 : i32, i32
  }
  func.func @transform_8(%arg0: i32) -> (i32, i32) {
    %c0_i32 = arith.constant 0 : i32
    %c0_i32_0 = arith.constant 0 : i32
    %c0_i32_1 = arith.constant 0 : i32
    return %c0_i32, %c0_i32_0 : i32, i32
  }
  func.func @transform_9(%arg0: i32) -> (i32, i32) {
    %c0_i32 = arith.constant 0 : i32
    %c0_i32_0 = arith.constant 0 : i32
    %c0_i32_1 = arith.constant 0 : i32
    return %c0_i32, %c0_i32_0 : i32, i32
  }
  func.func @transform_10(%arg0: i32) -> (i32, i32) {
    %c0_i32 = arith.constant 0 : i32
    %c0_i32_0 = arith.constant 0 : i32
    %c0_i32_1 = arith.constant 0 : i32
    return %c0_i32, %c0_i32_0 : i32, i32
  }
  func.func @transform_11(%arg0: i32) -> (i32, i32) {
    %c0_i32 = arith.constant 0 : i32
    %c0_i32_0 = arith.constant 0 : i32
    %c0_i32_1 = arith.constant 0 : i32
    return %c0_i32, %c0_i32_0 : i32, i32
  }
  func.func @transform_12(%arg0: i32) -> (i32, i32) {
    %c0_i32 = arith.constant 0 : i32
    %c0_i32_0 = arith.constant 0 : i32
    %c0_i32_1 = arith.constant 0 : i32
    return %c0_i32, %c0_i32_0 : i32, i32
  }
  func.func @transform_13(%arg0: i32) -> (i32, i32) {
    %c0_i32 = arith.constant 0 : i32
    %c0_i32_0 = arith.constant 0 : i32
    return %arg0, %c0_i32 : i32, i32
  }
}

</mosaic_0001>

<llo_original>
// kernel: tpu_custom_call.1
$region0: #{tpu_custom_call.1}
  #allocation0 [shape = 'u32[]', space=smem, size = 0x4, offset = 0x4, fixed_abs, tag = 'smem constant byte address 0x4 - core index']
  #allocation1 [shape = 'u32[72,128]{1,0:T(1,128)}', space=vmem, size = 0x9000, scoped, tag = 'internal scratch']
  %s0 = inlined_call_operand.vmem [shape: f32[16,32], index: 0, kind: input, shape index: {}]
  %s1 = inlined_call_operand.vmem [shape: f32[1,32], index: 1, kind: input, shape index: {}]
  %s2 = inlined_call_operand.vmem [shape: f32[1,32], index: 2, kind: input, shape index: {}]
  %s3 = inlined_call_operand.vmem [shape: bf16[32,96], index: 3, kind: input, shape index: {}]
  %s4 = inlined_call_operand.vmem [shape: f32[1,96], index: 4, kind: input, shape index: {}]
  %s5 = inlined_call_operand.vmem [shape: bf16[32,32], index: 5, kind: input, shape index: {}]
  %s6 = inlined_call_operand.vmem [shape: f32[1,32], index: 6, kind: input, shape index: {}]
  %s7 = inlined_call_operand.vmem [shape: f32[1,32], index: 7, kind: input, shape index: {}]
  %s8 = inlined_call_operand.vmem [shape: f32[1,32], index: 8, kind: input, shape index: {}]
  %s9 = inlined_call_operand.vmem [shape: bf16[32,128], index: 9, kind: input, shape index: {}]
  %s10 = inlined_call_operand.vmem [shape: f32[1,128], index: 10, kind: input, shape index: {}]
  %s11 = inlined_call_operand.vmem [shape: bf16[128,32], index: 11, kind: input, shape index: {}]
  %s12 = inlined_call_operand.vmem [shape: f32[1,32], index: 12, kind: input, shape index: {}]
  %s13 = inlined_call_operand.hbm [shape: f32[16,32], index: 13, kind: output, shape index: {}]
  %s14 = sld [smem:[#allocation0]]
  $region62: #{tpu_custom_call.1} parent=0
    _
  %s16 = ssub.s32 1, %s14
  %s17 = scalar_select 0, %s16, %s14
  $region1: #{tpu_custom_call.1} parent=0
    #allocation2 [shape = 'u8[8192]{0}', space=vmem, size = 0x2000, scoped, tag = 'output window, operand 0, single buffered']
    #allocation3 [shape = 's32[1]{0}', space=sflag, size = 0x4, scoped, tag = 'scoped memory for tpu_custom_call.1']
    %18 = vsyncpa [#allocation3], 0
    // Predicated region
    $region2: #{tpu_custom_call.1} parent=1 // pred_check
      _
    $region3: #{tpu_custom_call.1} parent=1 // pred_check_branch
      %20 = sbr.rel (0) target = $region5
    $region4: #{tpu_custom_call.1} parent=1 // pred_region
      _
    $region5: #{tpu_custom_call.1} parent=1 // pred_fallthru
      _
    // Predicated region
    $region6: #{tpu_custom_call.1} parent=1 // pred_check
      _
    $region7: #{tpu_custom_call.1} parent=1 // pred_check_branch
      %22 = sbr.rel (0) target = $region9
    $region8: #{tpu_custom_call.1} parent=1 // pred_region
      _
    $region9: #{tpu_custom_call.1} parent=1 // pred_fallthru
      _
    // Predicated region
    $region10: #{tpu_custom_call.1} parent=1 // pred_check
      _
    $region11: #{tpu_custom_call.1} parent=1 // pred_check_branch
      %24 = sbr.rel (0) target = $region13
    $region12: #{tpu_custom_call.1} parent=1 // pred_region
      _
    $region13: #{tpu_custom_call.1} parent=1 // pred_fallthru
      _
    // Predicated region
    $region14: #{tpu_custom_call.1} parent=1 // pred_check
      _
    $region15: #{tpu_custom_call.1} parent=1 // pred_check_branch
      %26 = sbr.rel (0) target = $region17
    $region16: #{tpu_custom_call.1} parent=1 // pred_region
      _
    $region17: #{tpu_custom_call.1} parent=1 // pred_fallthru
      _
    // Predicated region
    $region18: #{tpu_custom_call.1} parent=1 // pred_check
      _
    $region19: #{tpu_custom_call.1} parent=1 // pred_check_branch
      %28 = sbr.rel (0) target = $region21
    $region20: #{tpu_custom_call.1} parent=1 // pred_region
      _
    $region21: #{tpu_custom_call.1} parent=1 // pred_fallthru
      _
    // Predicated region
    $region22: #{tpu_custom_call.1} parent=1 // pred_check
      _
    $region23: #{tpu_custom_call.1} parent=1 // pred_check_branch
      %30 = sbr.rel (0) target = $region25
    $region24: #{tpu_custom_call.1} parent=1 // pred_region
      _
    $region25: #{tpu_custom_call.1} parent=1 // pred_fallthru
      _
    // Predicated region
    $region26: #{tpu_custom_call.1} parent=1 // pred_check
      _
    $region27: #{tpu_custom_call.1} parent=1 // pred_check_branch
      %32 = sbr.rel (0) target = $region29
    $region28: #{tpu_custom_call.1} parent=1 // pred_region
      _
    $region29: #{tpu_custom_call.1} parent=1 // pred_fallthru
      _
    // Predicated region
    $region30: #{tpu_custom_call.1} parent=1 // pred_check
      _
    $region31: #{tpu_custom_call.1} parent=1 // pred_check_branch
      %34 = sbr.rel (0) target = $region33
    $region32: #{tpu_custom_call.1} parent=1 // pred_region
      _
    $region33: #{tpu_custom_call.1} parent=1 // pred_fallthru
      _
    // Predicated region
    $region34: #{tpu_custom_call.1} parent=1 // pred_check
      _
    $region35: #{tpu_custom_call.1} parent=1 // pred_check_branch
      %36 = sbr.rel (0) target = $region37
    $region36: #{tpu_custom_call.1} parent=1 // pred_region
      _
    $region37: #{tpu_custom_call.1} parent=1 // pred_fallthru
      _
    // Predicated region
    $region38: #{tpu_custom_call.1} parent=1 // pred_check
      _
    $region39: #{tpu_custom_call.1} parent=1 // pred_check_branch
      %38 = sbr.rel (0) target = $region41
    $region40: #{tpu_custom_call.1} parent=1 // pred_region
      _
    $region41: #{tpu_custom_call.1} parent=1 // pred_fallthru
      _
    // Predicated region
    $region42: #{tpu_custom_call.1} parent=1 // pred_check
      _
    $region43: #{tpu_custom_call.1} parent=1 // pred_check_branch
      %40 = sbr.rel (0) target = $region45
    $region44: #{tpu_custom_call.1} parent=1 // pred_region
      _
    $region45: #{tpu_custom_call.1} parent=1 // pred_fallthru
      _
    // Predicated region
    $region46: #{tpu_custom_call.1} parent=1 // pred_check
      _
    $region47: #{tpu_custom_call.1} parent=1 // pred_check_branch
      %42 = sbr.rel (0) target = $region49
    $region48: #{tpu_custom_call.1} parent=1 // pred_region
      _
    $region49: #{tpu_custom_call.1} parent=1 // pred_fallthru
      _
    // Predicated region
    $region50: #{tpu_custom_call.1} parent=1 // pred_check
      _
    $region51: #{tpu_custom_call.1} parent=1 // pred_check_branch
      %44 = sbr.rel (0) target = $region53
    $region52: #{tpu_custom_call.1} parent=1 // pred_region
      _
    $region53: #{tpu_custom_call.1} parent=1 // pred_fallthru
      _
    %v46 = vld [vmem:[%s0] sm:$0xff]
    %v47 = vld [vmem:[%s0 + $0x8] sm:$0xff]
    %v48 = vld [vmem:[%s1] sm:$0x1]
    %v49 = vld [vmem:[%s2] sm:$0x1]
    %vm50 = vcmask 261120
    %v51 = vsel %vm50, %v46, 0.0
    %52 = vadd.xlane.f32.xlu0 %v51
    %v53 = vpop.xlane.xlu0 %52
    %v54 = vsel %vm50, %v47, 0.0
    %55 = vadd.xlane.f32.xlu0 %v54
    %v56 = vpop.xlane.xlu0 %55
    %v57 = vrcp.pop 32.0
    %v58 = vmul.f32 32.0, %v57
    %v59 = vsub.f32 1.0, %v58
    %v60 = vmul.f32 %v57, %v59
    %v61 = vadd.f32 %v57, %v60
    %vm62 = vweird.f32 %v57
    %v63 = vsel %vm62, %v57, %v61
    %v64 = vmul.f32 %v53, %v63
    %v65 = vmul.f32 %v56, %v63
    %v66 = vsub.f32 %v46, %v64
    %v67 = vsub.f32 %v47, %v65
    %v68 = vmul.f32 %v66, %v66
    %v69 = vmul.f32 %v67, %v67
    %v70 = vsel %vm50, %v68, 0.0
    %71 = vadd.xlane.f32.xlu0 %v70
    %v72 = vpop.xlane.xlu0 %71
    %v73 = vsel %vm50, %v69, 0.0
    %74 = vadd.xlane.f32.xlu0 %v73
    %v75 = vpop.xlane.xlu0 %74
    %v76 = vmul.f32 %v72, %v63
    %v77 = vmul.f32 %v75, %v63
    %v78 = vadd.f32 %v76, 1e-05
    %v79 = vadd.f32 %v77, 1e-05
    %v80 = vrsqrt.pop %v78
    %v81 = vmul.f32 %v80, %v78
    %v82 = vmul.f32 %v81, %v80
    %v83 = vmul.f32 0.5, %v82
    %v84 = vsub.f32 1.5, %v83
    %v85 = vmul.f32 %v80, %v84
    %vm86 = vweird.f32 %v78
    %vm87 = vweird.f32 %v80
    %vm88 = vmor %vm86, %vm87
    %v89 = vsel %vm88, %v80, %v85
    %v90 = vrsqrt.pop %v79
    %v91 = vmul.f32 %v90, %v79
    %v92 = vmul.f32 %v91, %v90
    %v93 = vmul.f32 0.5, %v92
    %v94 = vsub.f32 1.5, %v93
    %v95 = vmul.f32 %v90, %v94
    %vm96 = vweird.f32 %v79
    %vm97 = vweird.f32 %v90
    %vm98 = vmor %vm96, %vm97
    %v99 = vsel %vm98, %v90, %v95
    %v100 = vmul.f32 %v66, %v89
    %v101 = vmul.f32 %v67, %v99
    %v103 = vperm.slane %v48, 0
    %v105 = vmul.f32 %v100, %v103
    %v106 = vmul.f32 %v101, %v103
    %v108 = vperm.slane %v49, 0
    %v110 = vadd.f32 %v105, %v108
    %v111 = vadd.f32 %v106, %v108
    %v112 = vpack.c.bf16 %v111, %v110
    %v113 = vld [vmem:[%s3] sm:$0xf]
    %v114 = vld [vmem:[%s3 + $0x4] sm:$0xf]
    %v115 = vld [vmem:[%s3 + $0x8] sm:$0xf]
    %v116 = vld [vmem:[%s3 + $0xc] sm:$0xf]
    %v117 = vld [vmem:[%s4] sm:$0x1]
    %v119 = vperm.slane %v117, 0
    %v125 = vunpack.c.l.b16 %v113
    %v126 = vunpack.c.l.b16 %v114
    %v127 = vunpack.c.l.b16 %v115
    %v128 = vunpack.c.l.b16 %v116
    %v129 = vpack.c.b16 %v126, %v125
    %v130 = vpack.c.b16 %v128, %v127
    %v134 = vsel %vm50, %v112, 0
    %136 = vmatpush.bf16.msra.mxu0 0
    %137 = vmatpush.bf16.msra.mxu0 0
    %138 = vmatpush.bf16.msra.mxu0 0
    %139 = vmatpush.bf16.msra.mxu0 0
    %140 = vmatpush.bf16.msra.mxu0 0
    %141 = vmatpush.bf16.msra.mxu0 0
    %142 = vmatpush.bf16.msra.mxu0 %v130
    %143 = vmatpush.bf16.msra.mxu0 %v129
    %144 = vmatmul.bf16.gmra.mxu0 %v134
    %v145 = vpop.f32.mrf.mxu0
    %v146 = vadd.f32 %v119, %v145
    %v147 = vpop.f32.mrf.mxu0
    %v148 = vadd.f32 %v119, %v147
    %149 = vdwg.mxu0
    %152 = vrot.lane.b32.xlu0 %v146, 120
    %v153 = vpop.permute.xlu0 %152
    %154 = vrot.lane.b32.xlu0 %v148, 120
    %v155 = vpop.permute.xlu0 %154
    %158 = vrot.lane.b32.xlu0 %v146, 112
    %v159 = vpop.permute.xlu0 %158
    %160 = vrot.lane.b32.xlu0 %v148, 112
    %v161 = vpop.permute.xlu0 %160
    %164 = vrot.lane.b32.xlu0 %v146, 104
    %v165 = vpop.permute.xlu0 %164
    %166 = vrot.lane.b32.xlu0 %v148, 104
    %v167 = vpop.permute.xlu0 %166
    %v170 = vlaneseq
    %v171 = vshrl.u32 %v170, 7
    %v172 = vlaneseq
    %v173 = vand.u32 %v172, 127
    %vm174 = vcmp.le.s32.totalorder %v173, %v171
    %v175 = vpack.c.bf16 %v146, %v146
    %v176 = vpack.c.bf16 %v153, %v153
    %v177 = vpack.c.bf16 %v159, %v159
    %v178 = vpack.c.bf16 %v165, %v165
    %v179 = vpack.c.bf16 %v148, %v148
    %v180 = vpack.c.bf16 %v155, %v155
    %v181 = vpack.c.bf16 %v161, %v161
    %v182 = vpack.c.bf16 %v167, %v167
    %v184 = vunpack.c.l.b16 %v175
    %v185 = vpack.c.b16 %v184, %v184
    %186 = vrot.lane.b32.xlu0 %v185, 96
    %v187 = vpop.permute.xlu0 %186
    %vm188 = vcmask 64512
    %v190 = vsel %vm188, %v175, 0
    %v193 = vsel %vm188, %v187, 0
    %195 = vmatpush.bf16.xpose.msra.mxu0 0
    %196 = vmatpush.bf16.xpose.msra.mxu0 0
    %197 = vmatpush.bf16.xpose.msra.mxu0 0
    %198 = vmatpush.bf16.xpose.msra.mxu0 0
    %199 = vmatpush.bf16.xpose.msra.mxu0 0
    %200 = vmatpush.bf16.xpose.msra.mxu0 0
    %201 = vmatpush.bf16.xpose.msra.mxu0 0
    %202 = vmatpush.bf16.xpose.msra.mxu0 %v193
    %203 = vmatmul.bf16.gmra.mxu0 %v190
    %v204 = vpop.f32.mrf.mxu0
    %v205 = vadd.f32 0.0, %v204
    %v206 = vpop.f32.mrf.mxu0
    %207 = vdwg.mxu0
    %v209 = vunpack.c.l.b16 %v176
    %v210 = vpack.c.b16 %v209, %v209
    %211 = vrot.lane.b32.xlu0 %v210, 96
    %v212 = vpop.permute.xlu0 %211
    %v214 = vsel %vm188, %v176, 0
    %v217 = vsel %vm188, %v212, 0
    %219 = vmatpush.bf16.xpose.msra.mxu0 0
    %220 = vmatpush.bf16.xpose.msra.mxu0 0
    %221 = vmatpush.bf16.xpose.msra.mxu0 0
    %222 = vmatpush.bf16.xpose.msra.mxu0 0
    %223 = vmatpush.bf16.xpose.msra.mxu0 0
    %224 = vmatpush.bf16.xpose.msra.mxu0 0
    %225 = vmatpush.bf16.xpose.msra.mxu0 0
    %226 = vmatpush.bf16.xpose.msra.mxu0 %v217
    %227 = vmatmul.bf16.gmra.mxu0 %v214
    %v228 = vpop.f32.mrf.mxu0
    %v229 = vadd.f32 0.0, %v228
    %v230 = vpop.f32.mrf.mxu0
    %231 = vdwg.mxu0
    %v233 = vunpack.c.l.b16 %v177
    %v234 = vpack.c.b16 %v233, %v233
    %235 = vrot.lane.b32.xlu0 %v234, 96
    %v236 = vpop.permute.xlu0 %235
    %v238 = vsel %vm188, %v177, 0
    %v241 = vsel %vm188, %v236, 0
    %243 = vmatpush.bf16.xpose.msra.mxu0 0
    %244 = vmatpush.bf16.xpose.msra.mxu0 0
    %245 = vmatpush.bf16.xpose.msra.mxu0 0
    %246 = vmatpush.bf16.xpose.msra.mxu0 0
    %247 = vmatpush.bf16.xpose.msra.mxu0 0
    %248 = vmatpush.bf16.xpose.msra.mxu0 0
    %249 = vmatpush.bf16.xpose.msra.mxu0 0
    %250 = vmatpush.bf16.xpose.msra.mxu0 %v241
    %251 = vmatmul.bf16.gmra.mxu0 %v238
    %v252 = vpop.f32.mrf.mxu0
    %v253 = vadd.f32 0.0, %v252
    %v254 = vpop.f32.mrf.mxu0
    %255 = vdwg.mxu0
    %v257 = vunpack.c.l.b16 %v178
    %v258 = vpack.c.b16 %v257, %v257
    %259 = vrot.lane.b32.xlu0 %v258, 96
    %v260 = vpop.permute.xlu0 %259
    %v262 = vsel %vm188, %v178, 0
    %v265 = vsel %vm188, %v260, 0
    %267 = vmatpush.bf16.xpose.msra.mxu0 0
    %268 = vmatpush.bf16.xpose.msra.mxu0 0
    %269 = vmatpush.bf16.xpose.msra.mxu0 0
    %270 = vmatpush.bf16.xpose.msra.mxu0 0
    %271 = vmatpush.bf16.xpose.msra.mxu0 0
    %272 = vmatpush.bf16.xpose.msra.mxu0 0
    %273 = vmatpush.bf16.xpose.msra.mxu0 0
    %274 = vmatpush.bf16.xpose.msra.mxu0 %v265
    %275 = vmatmul.bf16.gmra.mxu0 %v262
    %v276 = vpop.f32.mrf.mxu0
    %v277 = vadd.f32 0.0, %v276
    %v278 = vpop.f32.mrf.mxu0
    %279 = vdwg.mxu0
    %v281 = vunpack.c.l.b16 %v179
    %v282 = vpack.c.b16 %v281, %v281
    %283 = vrot.lane.b32.xlu0 %v282, 96
    %v284 = vpop.permute.xlu0 %283
    %v286 = vsel %vm188, %v179, 0
    %v289 = vsel %vm188, %v284, 0
    %291 = vmatpush.bf16.xpose.msra.mxu0 0
    %292 = vmatpush.bf16.xpose.msra.mxu0 0
    %293 = vmatpush.bf16.xpose.msra.mxu0 0
    %294 = vmatpush.bf16.xpose.msra.mxu0 0
    %295 = vmatpush.bf16.xpose.msra.mxu0 0
    %296 = vmatpush.bf16.xpose.msra.mxu0 0
    %297 = vmatpush.bf16.xpose.msra.mxu0 0
    %298 = vmatpush.bf16.xpose.msra.mxu0 %v289
    %299 = vmatmul.bf16.gmra.mxu0 %v286
    %v300 = vpop.f32.mrf.mxu0
    %v301 = vadd.f32 0.0, %v300
    %v302 = vpop.f32.mrf.mxu0
    %303 = vdwg.mxu0
    %v305 = vunpack.c.l.b16 %v180
    %v306 = vpack.c.b16 %v305, %v305
    %307 = vrot.lane.b32.xlu0 %v306, 96
    %v308 = vpop.permute.xlu0 %307
    %v310 = vsel %vm188, %v180, 0
    %v313 = vsel %vm188, %v308, 0
    %315 = vmatpush.bf16.xpose.msra.mxu0 0
    %316 = vmatpush.bf16.xpose.msra.mxu0 0
    %317 = vmatpush.bf16.xpose.msra.mxu0 0
    %318 = vmatpush.bf16.xpose.msra.mxu0 0
    %319 = vmatpush.bf16.xpose.msra.mxu0 0
    %320 = vmatpush.bf16.xpose.msra.mxu0 0
    %321 = vmatpush.bf16.xpose.msra.mxu0 0
    %322 = vmatpush.bf16.xpose.msra.mxu0 %v313
    %323 = vmatmul.bf16.gmra.mxu0 %v310
    %v324 = vpop.f32.mrf.mxu0
    %v325 = vadd.f32 0.0, %v324
    %v326 = vpop.f32.mrf.mxu0
    %327 = vdwg.mxu0
    %v329 = vunpack.c.l.b16 %v181
    %v330 = vpack.c.b16 %v329, %v329
    %331 = vrot.lane.b32.xlu0 %v330, 96
    %v332 = vpop.permute.xlu0 %331
    %v334 = vsel %vm188, %v181, 0
    %v337 = vsel %vm188, %v332, 0
    %339 = vmatpush.bf16.xpose.msra.mxu0 0
    %340 = vmatpush.bf16.xpose.msra.mxu0 0
    %341 = vmatpush.bf16.xpose.msra.mxu0 0
    %342 = vmatpush.bf16.xpose.msra.mxu0 0
    %343 = vmatpush.bf16.xpose.msra.mxu0 0
    %344 = vmatpush.bf16.xpose.msra.mxu0 0
    %345 = vmatpush.bf16.xpose.msra.mxu0 0
    %346 = vmatpush.bf16.xpose.msra.mxu0 %v337
    %347 = vmatmul.bf16.gmra.mxu0 %v334
    %v348 = vpop.f32.mrf.mxu0
    %v349 = vadd.f32 0.0, %v348
    %v350 = vpop.f32.mrf.mxu0
    %351 = vdwg.mxu0
    %v353 = vunpack.c.l.b16 %v182
    %v354 = vpack.c.b16 %v353, %v353
    %355 = vrot.lane.b32.xlu0 %v354, 96
    %v356 = vpop.permute.xlu0 %355
    %v358 = vsel %vm188, %v182, 0
    %v361 = vsel %vm188, %v356, 0
    %363 = vmatpush.bf16.xpose.msra.mxu0 0
    %364 = vmatpush.bf16.xpose.msra.mxu0 0
    %365 = vmatpush.bf16.xpose.msra.mxu0 0
    %366 = vmatpush.bf16.xpose.msra.mxu0 0
    %367 = vmatpush.bf16.xpose.msra.mxu0 0
    %368 = vmatpush.bf16.xpose.msra.mxu0 0
    %369 = vmatpush.bf16.xpose.msra.mxu0 0
    %370 = vmatpush.bf16.xpose.msra.mxu0 %v361
    %371 = vmatmul.bf16.gmra.mxu0 %v358
    %v372 = vpop.f32.mrf.mxu0
    %v373 = vadd.f32 0.0, %v372
    %v374 = vpop.f32.mrf.mxu0
    %375 = vdwg.mxu0
    %v376 = vsel %vm174, 1, 0
    %vm377 = vcmp.eq.s32.totalorder %v376, 1
    %v378 = vsel %vm377, %v205, -1e+30
    %v379 = vsel %vm377, %v229, -1e+30
    %v380 = vsel %vm377, %v253, -1e+30
    %v381 = vsel %vm377, %v277, -1e+30
    %v382 = vsel %vm377, %v301, -1e+30
    %v383 = vsel %vm377, %v325, -1e+30
    %v384 = vsel %vm377, %v349, -1e+30
    %v385 = vsel %vm377, %v373, -1e+30
    %v386 = vsel %vm188, %v378, -inf
    %387 = vmax.xlane.f32.xlu0 %v386
    %v388 = vpop.xlane.xlu0 %387
    %v389 = vsel %vm188, %v379, -inf
    %390 = vmax.xlane.f32.xlu0 %v389
    %v391 = vpop.xlane.xlu0 %390
    %v392 = vsel %vm188, %v380, -inf
    %393 = vmax.xlane.f32.xlu0 %v392
    %v394 = vpop.xlane.xlu0 %393
    %v395 = vsel %vm188, %v381, -inf
    %396 = vmax.xlane.f32.xlu0 %v395
    %v397 = vpop.xlane.xlu0 %396
    %v398 = vsel %vm188, %v382, -inf
    %399 = vmax.xlane.f32.xlu0 %v398
    %v400 = vpop.xlane.xlu0 %399
    %v401 = vsel %vm188, %v383, -inf
    %402 = vmax.xlane.f32.xlu0 %v401
    %v403 = vpop.xlane.xlu0 %402
    %v404 = vsel %vm188, %v384, -inf
    %405 = vmax.xlane.f32.xlu0 %v404
    %v406 = vpop.xlane.xlu0 %405
    %v407 = vsel %vm188, %v385, -inf
    %408 = vmax.xlane.f32.xlu0 %v407
    %v409 = vpop.xlane.xlu0 %408
    %v410 = vsub.f32 %v378, %v388
    %v411 = vsub.f32 %v379, %v391
    %v412 = vsub.f32 %v380, %v394
    %v413 = vsub.f32 %v381, %v397
    %v414 = vsub.f32 %v382, %v400
    %v415 = vsub.f32 %v383, %v403
    %v416 = vsub.f32 %v384, %v406
    %v417 = vsub.f32 %v385, %v409
    %v418 = vmul.f32 %v410, 1.442695
    %v419 = vpow.pop %v418
    %v420 = vmul.f32 %v411, 1.442695
    %v421 = vpow.pop %v420
    %v422 = vmul.f32 %v412, 1.442695
    %v423 = vpow.pop %v422
    %v424 = vmul.f32 %v413, 1.442695
    %v425 = vpow.pop %v424
    %v426 = vmul.f32 %v414, 1.442695
    %v427 = vpow.pop %v426
    %v428 = vmul.f32 %v415, 1.442695
    %v429 = vpow.pop %v428
    %v430 = vmul.f32 %v416, 1.442695
    %v431 = vpow.pop %v430
    %v432 = vmul.f32 %v417, 1.442695
    %v433 = vpow.pop %v432
    %v434 = vsel %vm188, %v419, 0.0
    %435 = vadd.xlane.f32.xlu0 %v434
    %v436 = vpop.xlane.xlu0 %435
    %v437 = vsel %vm188, %v421, 0.0
    %438 = vadd.xlane.f32.xlu0 %v437
    %v439 = vpop.xlane.xlu0 %438
    %v440 = vsel %vm188, %v423, 0.0
    %441 = vadd.xlane.f32.xlu0 %v440
    %v442 = vpop.xlane.xlu0 %441
    %v443 = vsel %vm188, %v425, 0.0
    %444 = vadd.xlane.f32.xlu0 %v443
    %v445 = vpop.xlane.xlu0 %444
    %v446 = vsel %vm188, %v427, 0.0
    %447 = vadd.xlane.f32.xlu0 %v446
    %v448 = vpop.xlane.xlu0 %447
    %v449 = vsel %vm188, %v429, 0.0
    %450 = vadd.xlane.f32.xlu0 %v449
    %v451 = vpop.xlane.xlu0 %450
    %v452 = vsel %vm188, %v431, 0.0
    %453 = vadd.xlane.f32.xlu0 %v452
    %v454 = vpop.xlane.xlu0 %453
    %v455 = vsel %vm188, %v433, 0.0
    %456 = vadd.xlane.f32.xlu0 %v455
    %v457 = vpop.xlane.xlu0 %456
    %v458 = vrcp.pop %v436
    %v459 = vrcp.pop %v439
    %v460 = vrcp.pop %v442
    %v461 = vrcp.pop %v445
    %v462 = vrcp.pop %v448
    %v463 = vrcp.pop %v451
    %v464 = vrcp.pop %v454
    %v465 = vrcp.pop %v457
    %v466 = vmul.f32 %v419, %v458
    %v467 = vmul.f32 %v421, %v459
    %v468 = vmul.f32 %v423, %v460
    %v469 = vmul.f32 %v425, %v461
    %v470 = vmul.f32 %v427, %v462
    %v471 = vmul.f32 %v429, %v463
    %v472 = vmul.f32 %v431, %v464
    %v473 = vmul.f32 %v433, %v465
    %v474 = vpack.c.bf16 %v466, %v466
    %v475 = vpack.c.bf16 %v467, %v467
    %v476 = vpack.c.bf16 %v468, %v468
    %v477 = vpack.c.bf16 %v469, %v469
    %v478 = vpack.c.bf16 %v470, %v470
    %v479 = vpack.c.bf16 %v471, %v471
    %v480 = vpack.c.bf16 %v472, %v472
    %v481 = vpack.c.bf16 %v473, %v473
    %482 = vrot.lane.b32.xlu0 %v185, 64
    %v483 = vpop.permute.xlu0 %482
    %v485 = vsel %vm188, %v474, 0
    %vm487 = vcmask 1043456
    %v489 = vsel %vm487, %v483, 0
    %491 = vmatpush.bf16.msra.mxu0 0
    %492 = vmatpush.bf16.msra.mxu0 0
    %493 = vmatpush.bf16.msra.mxu0 0
    %494 = vmatpush.bf16.msra.mxu0 0
    %495 = vmatpush.bf16.msra.mxu0 0
    %496 = vmatpush.bf16.msra.mxu0 0
    %497 = vmatpush.bf16.msra.mxu0 0
    %498 = vmatpush.bf16.msra.mxu0 %v489
    %499 = vmatmul.bf16.gmra.mxu0 %v485
    %v500 = vpop.f32.mrf.mxu0
    %v501 = vadd.f32 0.0, %v500
    %v502 = vpop.f32.mrf.mxu0
    %503 = vdwg.mxu0
    %504 = vrot.lane.b32.xlu0 %v210, 64
    %v505 = vpop.permute.xlu0 %504
    %v507 = vsel %vm188, %v475, 0
    %v510 = vsel %vm487, %v505, 0
    %512 = vmatpush.bf16.msra.mxu0 0
    %513 = vmatpush.bf16.msra.mxu0 0
    %514 = vmatpush.bf16.msra.mxu0 0
    %515 = vmatpush.bf16.msra.mxu0 0
    %516 = vmatpush.bf16.msra.mxu0 0
    %517 = vmatpush.bf16.msra.mxu0 0
    %518 = vmatpush.bf16.msra.mxu0 0
    %519 = vmatpush.bf16.msra.mxu0 %v510
    %520 = vmatmul.bf16.gmra.mxu0 %v507
    %v521 = vpop.f32.mrf.mxu0
    %v522 = vadd.f32 0.0, %v521
    %v523 = vpop.f32.mrf.mxu0
    %524 = vdwg.mxu0
    %525 = vrot.lane.b32.xlu0 %v234, 64
    %v526 = vpop.permute.xlu0 %525
    %v528 = vsel %vm188, %v476, 0
    %v531 = vsel %vm487, %v526, 0
    %533 = vmatpush.bf16.msra.mxu0 0
    %534 = vmatpush.bf16.msra.mxu0 0
    %535 = vmatpush.bf16.msra.mxu0 0
    %536 = vmatpush.bf16.msra.mxu0 0
    %537 = vmatpush.bf16.msra.mxu0 0
    %538 = vmatpush.bf16.msra.mxu0 0
    %539 = vmatpush.bf16.msra.mxu0 0
    %540 = vmatpush.bf16.msra.mxu0 %v531
    %541 = vmatmul.bf16.gmra.mxu0 %v528
    %v542 = vpop.f32.mrf.mxu0
    %v543 = vadd.f32 0.0, %v542
    %v544 = vpop.f32.mrf.mxu0
    %545 = vdwg.mxu0
    %546 = vrot.lane.b32.xlu0 %v258, 64
    %v547 = vpop.permute.xlu0 %546
    %v549 = vsel %vm188, %v477, 0
    %v552 = vsel %vm487, %v547, 0
    %554 = vmatpush.bf16.msra.mxu0 0
    %555 = vmatpush.bf16.msra.mxu0 0
    %556 = vmatpush.bf16.msra.mxu0 0
    %557 = vmatpush.bf16.msra.mxu0 0
    %558 = vmatpush.bf16.msra.mxu0 0
    %559 = vmatpush.bf16.msra.mxu0 0
    %560 = vmatpush.bf16.msra.mxu0 0
    %561 = vmatpush.bf16.msra.mxu0 %v552
    %562 = vmatmul.bf16.gmra.mxu0 %v549
    %v563 = vpop.f32.mrf.mxu0
    %v564 = vadd.f32 0.0, %v563
    %v565 = vpop.f32.mrf.mxu0
    %566 = vdwg.mxu0
    %567 = vrot.lane.b32.xlu0 %v282, 64
    %v568 = vpop.permute.xlu0 %567
    %v570 = vsel %vm188, %v478, 0
    %v573 = vsel %vm487, %v568, 0
    %575 = vmatpush.bf16.msra.mxu0 0
    %576 = vmatpush.bf16.msra.mxu0 0
    %577 = vmatpush.bf16.msra.mxu0 0
    %578 = vmatpush.bf16.msra.mxu0 0
    %579 = vmatpush.bf16.msra.mxu0 0
    %580 = vmatpush.bf16.msra.mxu0 0
    %581 = vmatpush.bf16.msra.mxu0 0
    %582 = vmatpush.bf16.msra.mxu0 %v573
    %583 = vmatmul.bf16.gmra.mxu0 %v570
    %v584 = vpop.f32.mrf.mxu0
    %v585 = vadd.f32 0.0, %v584
    %v586 = vpop.f32.mrf.mxu0
    %587 = vdwg.mxu0
    %588 = vrot.lane.b32.xlu0 %v306, 64
    %v589 = vpop.permute.xlu0 %588
    %v591 = vsel %vm188, %v479, 0
    %v594 = vsel %vm487, %v589, 0
    %596 = vmatpush.bf16.msra.mxu0 0
    %597 = vmatpush.bf16.msra.mxu0 0
    %598 = vmatpush.bf16.msra.mxu0 0
    %599 = vmatpush.bf16.msra.mxu0 0
    %600 = vmatpush.bf16.msra.mxu0 0
    %601 = vmatpush.bf16.msra.mxu0 0
    %602 = vmatpush.bf16.msra.mxu0 0
    %603 = vmatpush.bf16.msra.mxu0 %v594
    %604 = vmatmul.bf16.gmra.mxu0 %v591
    %v605 = vpop.f32.mrf.mxu0
    %v606 = vadd.f32 0.0, %v605
    %v607 = vpop.f32.mrf.mxu0
    %608 = vdwg.mxu0
    %609 = vrot.lane.b32.xlu0 %v330, 64
    %v610 = vpop.permute.xlu0 %609
    %v612 = vsel %vm188, %v480, 0
    %v615 = vsel %vm487, %v610, 0
    %617 = vmatpush.bf16.msra.mxu0 0
    %618 = vmatpush.bf16.msra.mxu0 0
    %619 = vmatpush.bf16.msra.mxu0 0
    %620 = vmatpush.bf16.msra.mxu0 0
    %621 = vmatpush.bf16.msra.mxu0 0
    %622 = vmatpush.bf16.msra.mxu0 0
    %623 = vmatpush.bf16.msra.mxu0 0
    %624 = vmatpush.bf16.msra.mxu0 %v615
    %625 = vmatmul.bf16.gmra.mxu0 %v612
    %v626 = vpop.f32.mrf.mxu0
    %v627 = vadd.f32 0.0, %v626
    %v628 = vpop.f32.mrf.mxu0
    %629 = vdwg.mxu0
    %630 = vrot.lane.b32.xlu0 %v354, 64
    %v631 = vpop.permute.xlu0 %630
    %v633 = vsel %vm188, %v481, 0
    %v636 = vsel %vm487, %v631, 0
    %638 = vmatpush.bf16.msra.mxu0 0
    %639 = vmatpush.bf16.msra.mxu0 0
    %640 = vmatpush.bf16.msra.mxu0 0
    %641 = vmatpush.bf16.msra.mxu0 0
    %642 = vmatpush.bf16.msra.mxu0 0
    %643 = vmatpush.bf16.msra.mxu0 0
    %644 = vmatpush.bf16.msra.mxu0 0
    %645 = vmatpush.bf16.msra.mxu0 %v636
    %646 = vmatmul.bf16.gmra.mxu0 %v633
    %v647 = vpop.f32.mrf.mxu0
    %v648 = vadd.f32 0.0, %v647
    %v649 = vpop.f32.mrf.mxu0
    %650 = vdwg.mxu0
    %653 = vrot.lane.b32.xlu0 %v522, 8
    %v654 = vpop.permute.xlu0 %653
    %655 = vrot.lane.b32.xlu0 %v606, 8
    %v656 = vpop.permute.xlu0 %655
    %661 = vrot.lane.b32.xlu0 %v543, 16
    %v662 = vpop.permute.xlu0 %661
    %663 = vrot.lane.b32.xlu0 %v627, 16
    %v664 = vpop.permute.xlu0 %663
    %669 = vrot.lane.b32.xlu0 %v564, 24
    %v670 = vpop.permute.xlu0 %669
    %671 = vrot.lane.b32.xlu0 %v648, 24
    %v672 = vpop.permute.xlu0 %671
    %v675 = vsel %vm188, %v501, %v654
    %v676 = vsel %vm188, %v585, %v656
    %vm677 = vcmask 130048
    %v678 = vsel %vm677, %v675, %v662
    %v679 = vsel %vm677, %v676, %v664
    %vm680 = vcmask 195584
    %v681 = vsel %vm680, %v678, %v670
    %v682 = vsel %vm680, %v679, %v672
    %v683 = vpack.c.bf16 %v682, %v681
    %v684 = vld [vmem:[%s5] sm:$0xf]
    %v685 = vld [vmem:[%s5 + $0x4] sm:$0xf]
    %v686 = vld [vmem:[%s5 + $0x8] sm:$0xf]
    %v687 = vld [vmem:[%s5 + $0xc] sm:$0xf]
    %v688 = vld [vmem:[%s6] sm:$0x1]
    %v690 = vperm.slane %v688, 0
    %v696 = vunpack.c.l.b16 %v684
    %v697 = vunpack.c.l.b16 %v685
    %v698 = vunpack.c.l.b16 %v686
    %v699 = vunpack.c.l.b16 %v687
    %v700 = vpack.c.b16 %v697, %v696
    %v701 = vpack.c.b16 %v699, %v698
    %v705 = vsel %vm50, %v683, 0
    %707 = vmatpush.bf16.msra.mxu0 0
    %708 = vmatpush.bf16.msra.mxu0 0
    %709 = vmatpush.bf16.msra.mxu0 0
    %710 = vmatpush.bf16.msra.mxu0 0
    %711 = vmatpush.bf16.msra.mxu0 0
    %712 = vmatpush.bf16.msra.mxu0 0
    %713 = vmatpush.bf16.msra.mxu0 %v701
    %714 = vmatpush.bf16.msra.mxu0 %v700
    %715 = vmatmul.bf16.gmra.mxu0 %v705
    %v716 = vpop.f32.mrf.mxu0
    %v717 = vadd.f32 %v690, %v716
    %v718 = vpop.f32.mrf.mxu0
    %v719 = vadd.f32 %v690, %v718
    %720 = vdwg.mxu0
    %v721 = vadd.f32 %v46, %v717
    %v722 = vadd.f32 %v47, %v719
    %v723 = vld [vmem:[%s7] sm:$0x1]
    %v724 = vld [vmem:[%s8] sm:$0x1]
    %v725 = vsel %vm50, %v721, 0.0
    %726 = vadd.xlane.f32.xlu0 %v725
    %v727 = vpop.xlane.xlu0 %726
    %v728 = vsel %vm50, %v722, 0.0
    %729 = vadd.xlane.f32.xlu0 %v728
    %v730 = vpop.xlane.xlu0 %729
    %v731 = vmul.f32 %v727, %v63
    %v732 = vmul.f32 %v730, %v63
    %v733 = vsub.f32 %v721, %v731
    %v734 = vsub.f32 %v722, %v732
    %v735 = vmul.f32 %v733, %v733
    %v736 = vmul.f32 %v734, %v734
    %v737 = vsel %vm50, %v735, 0.0
    %738 = vadd.xlane.f32.xlu0 %v737
    %v739 = vpop.xlane.xlu0 %738
    %v740 = vsel %vm50, %v736, 0.0
    %741 = vadd.xlane.f32.xlu0 %v740
    %v742 = vpop.xlane.xlu0 %741
    %v743 = vmul.f32 %v739, %v63
    %v744 = vmul.f32 %v742, %v63
    %v745 = vadd.f32 %v743, 1e-05
    %v746 = vadd.f32 %v744, 1e-05
    %v747 = vrsqrt.pop %v745
    %v748 = vmul.f32 %v747, %v745
    %v749 = vmul.f32 %v748, %v747
    %v750 = vmul.f32 0.5, %v749
    %v751 = vsub.f32 1.5, %v750
    %v752 = vmul.f32 %v747, %v751
    %vm753 = vweird.f32 %v745
    %vm754 = vweird.f32 %v747
    %vm755 = vmor %vm753, %vm754
    %v756 = vsel %vm755, %v747, %v752
    %v757 = vrsqrt.pop %v746
    %v758 = vmul.f32 %v757, %v746
    %v759 = vmul.f32 %v758, %v757
    %v760 = vmul.f32 0.5, %v759
    %v761 = vsub.f32 1.5, %v760
    %v762 = vmul.f32 %v757, %v761
    %vm763 = vweird.f32 %v746
    %vm764 = vweird.f32 %v757
    %vm765 = vmor %vm763, %vm764
    %v766 = vsel %vm765, %v757, %v762
    %v767 = vmul.f32 %v733, %v756
    %v768 = vmul.f32 %v734, %v766
    %v770 = vperm.slane %v723, 0
    %v772 = vmul.f32 %v767, %v770
    %v773 = vmul.f32 %v768, %v770
    %v775 = vperm.slane %v724, 0
    %v777 = vadd.f32 %v772, %v775
    %v778 = vadd.f32 %v773, %v775
    %v779 = vpack.c.bf16 %v778, %v777
    %v780 = vld [vmem:[%s9] sm:$0xf]
    %v781 = vld [vmem:[%s9 + $0x4] sm:$0xf]
    %v782 = vld [vmem:[%s9 + $0x8] sm:$0xf]
    %v783 = vld [vmem:[%s9 + $0xc] sm:$0xf]
    %v784 = vld [vmem:[%s10] sm:$0x1]
    %v786 = vperm.slane %v784, 0
    %v792 = vunpack.c.l.b16 %v780
    %v793 = vunpack.c.l.b16 %v781
    %v794 = vunpack.c.l.b16 %v782
    %v795 = vunpack.c.l.b16 %v783
    %v796 = vpack.c.b16 %v793, %v792
    %v797 = vpack.c.b16 %v795, %v794
    %v801 = vsel %vm50, %v779, 0
    %803 = vmatpush.bf16.msra.mxu0 0
    %804 = vmatpush.bf16.msra.mxu0 0
    %805 = vmatpush.bf16.msra.mxu0 0
    %806 = vmatpush.bf16.msra.mxu0 0
    %807 = vmatpush.bf16.msra.mxu0 0
    %808 = vmatpush.bf16.msra.mxu0 0
    %809 = vmatpush.bf16.msra.mxu0 %v797
    %810 = vmatpush.bf16.msra.mxu0 %v796
    %811 = vmatmul.bf16.gmra.mxu0 %v801
    %v812 = vpop.f32.mrf.mxu0
    %v813 = vadd.f32 %v786, %v812
    %v814 = vpop.f32.mrf.mxu0
    %v815 = vadd.f32 %v786, %v814
    %816 = vdwg.mxu0
    %v817 = vmul.f32 %v813, 0.5
    %v818 = vmul.f32 %v815, 0.5
    %v819 = vmul.f32 %v813, 0.044715
    %v820 = vmul.f32 %v815, 0.044715
    %v821 = vmul.f32 %v819, %v813
    %v822 = vmul.f32 %v820, %v815
    %v823 = vmul.f32 %v821, %v813
    %v824 = vmul.f32 %v822, %v815
    %v825 = vadd.f32 %v813, %v823
    %v826 = vadd.f32 %v815, %v824
    %v827 = vmul.f32 %v825, 0.7978846
    %v828 = vmul.f32 %v826, 0.7978846
    %v829 = vtanh.pop %v827
    %v830 = vtanh.pop %v828
    %v831 = vadd.f32 %v829, 1.0
    %v832 = vadd.f32 %v830, 1.0
    %v833 = vmul.f32 %v817, %v831
    %v834 = vmul.f32 %v818, %v832
    %v835 = vpack.c.bf16 %v834, %v833
    %v836 = vld [vmem:[%s11] sm:$0xf]
    %v837 = vld [vmem:[%s11 + $0x4] sm:$0xf]
    %v838 = vld [vmem:[%s11 + $0x8] sm:$0xf]
    %v839 = vld [vmem:[%s11 + $0xc] sm:$0xf]
    %v840 = vld [vmem:[%s11 + $0x10] sm:$0xf]
    %v841 = vld [vmem:[%s11 + $0x14] sm:$0xf]
    %v842 = vld [vmem:[%s11 + $0x18] sm:$0xf]
    %v843 = vld [vmem:[%s11 + $0x1c] sm:$0xf]
    %v844 = vld [vmem:[%s11 + $0x20] sm:$0xf]
    %v845 = vld [vmem:[%s11 + $0x24] sm:$0xf]
    %v846 = vld [vmem:[%s11 + $0x28] sm:$0xf]
    %v847 = vld [vmem:[%s11 + $0x2c] sm:$0xf]
    %v848 = vld [vmem:[%s11 + $0x30] sm:$0xf]
    %v849 = vld [vmem:[%s11 + $0x34] sm:$0xf]
    %v850 = vld [vmem:[%s11 + $0x38] sm:$0xf]
    %v851 = vld [vmem:[%s11 + $0x3c] sm:$0xf]
    %v852 = vld [vmem:[%s12] sm:$0x1]
    %v854 = vperm.slane %v852, 0
    %v872 = vunpack.c.l.b16 %v836
    %v873 = vunpack.c.l.b16 %v837
    %v874 = vunpack.c.l.b16 %v838
    %v875 = vunpack.c.l.b16 %v839
    %v876 = vunpack.c.l.b16 %v840
    %v877 = vunpack.c.l.b16 %v841
    %v878 = vunpack.c.l.b16 %v842
    %v879 = vunpack.c.l.b16 %v843
    %v880 = vunpack.c.l.b16 %v844
    %v881 = vunpack.c.l.b16 %v845
    %v882 = vunpack.c.l.b16 %v846
    %v883 = vunpack.c.l.b16 %v847
    %v884 = vunpack.c.l.b16 %v848
    %v885 = vunpack.c.l.b16 %v849
    %v886 = vunpack.c.l.b16 %v850
    %v887 = vunpack.c.l.b16 %v851
    %v888 = vpack.c.b16 %v873, %v872
    %v889 = vpack.c.b16 %v875, %v874
    %v890 = vpack.c.b16 %v877, %v876
    %v891 = vpack.c.b16 %v879, %v878
    %v892 = vpack.c.b16 %v881, %v880
    %v893 = vpack.c.b16 %v883, %v882
    %v894 = vpack.c.b16 %v885, %v884
    %v895 = vpack.c.b16 %v887, %v886
    %904 = vmatpush.bf16.msra.mxu0 %v895
    %905 = vmatpush.bf16.msra.mxu0 %v894
    %906 = vmatpush.bf16.msra.mxu0 %v893
    %907 = vmatpush.bf16.msra.mxu0 %v892
    %908 = vmatpush.bf16.msra.mxu0 %v891
    %909 = vmatpush.bf16.msra.mxu0 %v890
    %910 = vmatpush.bf16.msra.mxu0 %v889
    %911 = vmatpush.bf16.msra.mxu0 %v888
    %912 = vmatmul.bf16.gmra.mxu0 %v835
    %v913 = vpop.f32.mrf.mxu0
    %v914 = vadd.f32 %v854, %v913
    %v915 = vpop.f32.mrf.mxu0
    %v916 = vadd.f32 %v854, %v915
    %917 = vdwg.mxu0
    %v918 = vadd.f32 %v721, %v914
    %v919 = vadd.f32 %v722, %v916
    %920 = vst.msk [vmem:[#allocation2] sm:$0xff] %vm50, %v918
    %921 = vst.msk [vmem:[#allocation2 + $0x8] sm:$0xff] %vm50, %v919
    // Predicated region
    $region54: #{tpu_custom_call.1} parent=1 // pred_check
      _
    $region55: #{tpu_custom_call.1} parent=1 // pred_check_branch
      %923 = sbr.rel (0) target = $region57
    $region56: #{tpu_custom_call.1} parent=1 // pred_region
      %925 = vsyncadd [#allocation3], 0
      %s926 = sshll.u32 [#allocation2], 4
      %s927 = int_to_ptr.vmem [resolvable:$true] %s926
      %s928 = sshll.u32 %s13, 4
      %s929 = int_to_ptr.hbm [resolvable:$true] %s928
      %934 = dma.vmem_to_hbm [thread:$0]  %s927, 256, %s929, [#allocation3], 128, 128, 8
    $region57: #{tpu_custom_call.1} parent=1 // pred_fallthru
      _
    // Predicated region
    $region58: #{tpu_custom_call.1} parent=1 // pred_check
      _
    $region59: #{tpu_custom_call.1} parent=1 // pred_check_branch
      %936 = sbr.rel (0) target = $region61
    $region60: #{tpu_custom_call.1} parent=1 // pred_region
      %938 = dma.done [#allocation3], 256
    $region61: #{tpu_custom_call.1} parent=1 // pred_fallthru
      _
    %939 = vsyncpa [#allocation3], 1

// kernel: tpu_custom_call.1
$region0: #{tpu_custom_call.1}
  #allocation0 [shape = 'u32[]', space=smem, size = 0x4, offset = 0x4, fixed_abs, tag = 'smem constant byte address 0x4 - core index']
  #allocation1 [shape = 'u32[72,128]{1,0:T(1,128)}', space=vmem, size = 0x9000, scoped, tag = 'internal scratch']
  %s0 = inlined_call_operand.vmem [shape: f32[16,32], index: 0, kind: input, shape index: {}]
  %s1 = inlined_call_operand.vmem [shape: f32[1,32], index: 1, kind: input, shape index: {}]
  %s2 = inlined_call_operand.vmem [shape: f32[1,32], index: 2, kind: input, shape index: {}]
  %s3 = inlined_call_operand.vmem [shape: bf16[32,96], index: 3, kind: input, shape index: {}]
  %s4 = inlined_call_operand.vmem [shape: f32[1,96], index: 4, kind: input, shape index: {}]
  %s5 = inlined_call_operand.vmem [shape: bf16[32,32], index: 5, kind: input, shape index: {}]
  %s6 = inlined_call_operand.vmem [shape: f32[1,32], index: 6, kind: input, shape index: {}]
  %s7 = inlined_call_operand.vmem [shape: f32[1,32], index: 7, kind: input, shape index: {}]
  %s8 = inlined_call_operand.vmem [shape: f32[1,32], index: 8, kind: input, shape index: {}]
  %s9 = inlined_call_operand.vmem [shape: bf16[32,128], index: 9, kind: input, shape index: {}]
  %s10 = inlined_call_operand.vmem [shape: f32[1,128], index: 10, kind: input, shape index: {}]
  %s11 = inlined_call_operand.vmem [shape: bf16[128,32], index: 11, kind: input, shape index: {}]
  %s12 = inlined_call_operand.vmem [shape: f32[1,32], index: 12, kind: input, shape index: {}]
  %s13 = inlined_call_operand.hbm [shape: f32[16,32], index: 13, kind: output, shape index: {}]
  %s14 = sld [smem:[#allocation0]]
  $region62: #{tpu_custom_call.1} parent=0
    _
  %s16 = ssub.s32 1, %s14
  %s17 = scalar_select 0, %s16, %s14
  $region1: #{tpu_custom_call.1} parent=0
    #allocation2 [shape = 'u8[8192]{0}', space=vmem, size = 0x2000, scoped, tag = 'output window, operand 0, single buffered']
    #allocation3 [shape = 's32[1]{0}', space=sflag, size = 0x4, scoped, tag = 'scoped memory for tpu_custom_call.1']
    %18 = vsyncpa [#allocation3], 0
    // Predicated region
    $region2: #{tpu_custom_call.1} parent=1 // pred_check
      _
    $region3: #{tpu_custom_call.1} parent=1 // pred_check_branch
      %20 = sbr.rel (0) target = $region5
    $region4: #{tpu_custom_call.1} parent=1 // pred_region
      _
    $region5: #{tpu_custom_call.1} parent=1 // pred_fallthru
      _
    // Predicated region
    $region6: #{tpu_custom_call.1} parent=1 // pred_check
      _
    $region7: #{tpu_custom_call.1} parent=1 // pred_check_branch
      %22 = sbr.rel (0) target = $region9
    $region8: #{tpu_custom_call.1} parent=1 // pred_region
      _
    $region9: #{tpu_custom_call.1} parent=1 // pred_fallthru
      _
    // Predicated region
    $region10: #{tpu_custom_call.1} parent=1 // pred_check
      _
    $region11: #{tpu_custom_call.1} parent=1 // pred_check_branch
      %24 = sbr.rel (0) target = $region13
    $region12: #{tpu_custom_call.1} parent=1 // pred_region
      _
    $region13: #{tpu_custom_call.1} parent=1 // pred_fallthru
      _
    // Predicated region
    $region14: #{tpu_custom_call.1} parent=1 // pred_check
      _
    $region15: #{tpu_custom_call.1} parent=1 // pred_check_branch
      %26 = sbr.rel (0) target = $region17
    $region16: #{tpu_custom_call.1} parent=1 // pred_region
      _
    $region17: #{tpu_custom_call.1} parent=1 // pred_fallthru
      _
    // Predicated region
    $region18: #{tpu_custom_call.1} parent=1 // pred_check
      _
    $region19: #{tpu_custom_call.1} parent=1 // pred_check_branch
      %28 = sbr.rel (0) target = $region21
    $region20: #{tpu_custom_call.1} parent=1 // pred_region
      _
    $region21: #{tpu_custom_call.1} parent=1 // pred_fallthru
      _
    // Predicated region
    $region22: #{tpu_custom_call.1} parent=1 // pred_check
      _
    $region23: #{tpu_custom_call.1} parent=1 // pred_check_branch
      %30 = sbr.rel (0) target = $region25
    $region24: #{tpu_custom_call.1} parent=1 // pred_region
      _
    $region25: #{tpu_custom_call.1} parent=1 // pred_fallthru
      _
    // Predicated region
    $region26: #{tpu_custom_call.1} parent=1 // pred_check
      _
    $region27: #{tpu_custom_call.1} parent=1 // pred_check_branch
      %32 = sbr.rel (0) target = $region29
    $region28: #{tpu_custom_call.1} parent=1 // pred_region
      _
    $region29: #{tpu_custom_call.1} parent=1 // pred_fallthru
      _
    // Predicated region
    $region30: #{tpu_custom_call.1} parent=1 // pred_check
      _
    $region31: #{tpu_custom_call.1} parent=1 // pred_check_branch
      %34 = sbr.rel (0) target = $region33
    $region32: #{tpu_custom_call.1} parent=1 // pred_region
      _
    $region33: #{tpu_custom_call.1} parent=1 // pred_fallthru
      _
    // Predicated region
    $region34: #{tpu_custom_call.1} parent=1 // pred_check
      _
    $region35: #{tpu_custom_call.1} parent=1 // pred_check_branch
      %36 = sbr.rel (0) target = $region37
    $region36: #{tpu_custom_call.1} parent=1 // pred_region
      _
    $region37: #{tpu_custom_call.1} parent=1 // pred_fallthru
      _
    // Predicated region
    $region38: #{tpu_custom_call.1} parent=1 // pred_check
      _
    $region39: #{tpu_custom_call.1} parent=1 // pred_check_branch
      %38 = sbr.rel (0) target = $region41
    $region40: #{tpu_custom_call.1} parent=1 // pred_region
      _
    $region41: #{tpu_custom_call.1} parent=1 // pred_fallthru
      _
    // Predicated region
    $region42: #{tpu_custom_call.1} parent=1 // pred_check
      _
    $region43: #{tpu_custom_call.1} parent=1 // pred_check_branch
      %40 = sbr.rel (0) target = $region45
    $region44: #{tpu_custom_call.1} parent=1 // pred_region
      _
    $region45: #{tpu_custom_call.1} parent=1 // pred_fallthru
      _
    // Predicated region
    $region46: #{tpu_custom_call.1} parent=1 // pred_check
      _
    $region47: #{tpu_custom_call.1} parent=1 // pred_check_branch
      %42 = sbr.rel (0) target = $region49
    $region48: #{tpu_custom_call.1} parent=1 // pred_region
      _
    $region49: #{tpu_custom_call.1} parent=1 // pred_fallthru
      _
    // Predicated region
    $region50: #{tpu_custom_call.1} parent=1 // pred_check
      _
    $region51: #{tpu_custom_call.1} parent=1 // pred_check_branch
      %44 = sbr.rel (0) target = $region53
    $region52: #{tpu_custom_call.1} parent=1 // pred_region
      _
    $region53: #{tpu_custom_call.1} parent=1 // pred_fallthru
      _
    %v46 = vld [vmem:[%s0] sm:$0xff]
    %v47 = vld [vmem:[%s0 + $0x8] sm:$0xff]
    %v48 = vld [vmem:[%s1] sm:$0x1]
    %v49 = vld [vmem:[%s2] sm:$0x1]
    %vm50 = vcmask 261120
    %v51 = vsel %vm50, %v46, 0.0
    %52 = vadd.xlane.f32.xlu0 %v51
    %v53 = vpop.xlane.xlu0 %52
    %v54 = vsel %vm50, %v47, 0.0
    %55 = vadd.xlane.f32.xlu0 %v54
    %v56 = vpop.xlane.xlu0 %55
    %v57 = vrcp.pop 32.0
    %v58 = vmul.f32 32.0, %v57
    %v59 = vsub.f32 1.0, %v58
    %v60 = vmul.f32 %v57, %v59
    %v61 = vadd.f32 %v57, %v60
    %vm62 = vweird.f32 %v57
    %v63 = vsel %vm62, %v57, %v61
    %v64 = vmul.f32 %v53, %v63
    %v65 = vmul.f32 %v56, %v63
    %v66 = vsub.f32 %v46, %v64
    %v67 = vsub.f32 %v47, %v65
    %v68 = vmul.f32 %v66, %v66
    %v69 = vmul.f32 %v67, %v67
    %v70 = vsel %vm50, %v68, 0.0
    %71 = vadd.xlane.f32.xlu0 %v70
    %v72 = vpop.xlane.xlu0 %71
    %v73 = vsel %vm50, %v69, 0.0
    %74 = vadd.xlane.f32.xlu0 %v73
    %v75 = vpop.xlane.xlu0 %74
    %v76 = vmul.f32 %v72, %v63
    %v77 = vmul.f32 %v75, %v63
    %v78 = vadd.f32 %v76, 1e-05
    %v79 = vadd.f32 %v77, 1e-05
    %v80 = vrsqrt.pop %v78
    %v81 = vmul.f32 %v80, %v78
    %v82 = vmul.f32 %v81, %v80
    %v83 = vmul.f32 0.5, %v82
    %v84 = vsub.f32 1.5, %v83
    %v85 = vmul.f32 %v80, %v84
    %vm86 = vweird.f32 %v78
    %vm87 = vweird.f32 %v80
    %vm88 = vmor %vm86, %vm87
    %v89 = vsel %vm88, %v80, %v85
    %v90 = vrsqrt.pop %v79
    %v91 = vmul.f32 %v90, %v79
    %v92 = vmul.f32 %v91, %v90
    %v93 = vmul.f32 0.5, %v92
    %v94 = vsub.f32 1.5, %v93
    %v95 = vmul.f32 %v90, %v94
    %vm96 = vweird.f32 %v79
    %vm97 = vweird.f32 %v90
    %vm98 = vmor %vm96, %vm97
    %v99 = vsel %vm98, %v90, %v95
    %v100 = vmul.f32 %v66, %v89
    %v101 = vmul.f32 %v67, %v99
    %v103 = vperm.slane %v48, 0
    %v105 = vmul.f32 %v100, %v103
    %v106 = vmul.f32 %v101, %v103
    %v108 = vperm.slane %v49, 0
    %v110 = vadd.f32 %v105, %v108
    %v111 = vadd.f32 %v106, %v108
    %v112 = vpack.c.bf16 %v111, %v110
    %v113 = vld [vmem:[%s3] sm:$0xf]
    %v114 = vld [vmem:[%s3 + $0x4] sm:$0xf]
    %v115 = vld [vmem:[%s3 + $0x8] sm:$0xf]
    %v116 = vld [vmem:[%s3 + $0xc] sm:$0xf]
    %v117 = vld [vmem:[%s4] sm:$0x1]
    %v119 = vperm.slane %v117, 0
    %v125 = vunpack.c.l.b16 %v113
    %v126 = vunpack.c.l.b16 %v114
    %v127 = vunpack.c.l.b16 %v115
    %v128 = vunpack.c.l.b16 %v116
    %v129 = vpack.c.b16 %v126, %v125
    %v130 = vpack.c.b16 %v128, %v127
    %v134 = vsel %vm50, %v112, 0
    %136 = vmatpush.bf16.msra.mxu0 0
    %137 = vmatpush.bf16.msra.mxu0 0
    %138 = vmatpush.bf16.msra.mxu0 0
    %139 = vmatpush.bf16.msra.mxu0 0
    %140 = vmatpush.bf16.msra.mxu0 0
    %141 = vmatpush.bf16.msra.mxu0 0
    %142 = vmatpush.bf16.msra.mxu0 %v130
    %143 = vmatpush.bf16.msra.mxu0 %v129
    %144 = vmatmul.bf16.gmra.mxu0 %v134
    %v145 = vpop.f32.mrf.mxu0
    %v146 = vadd.f32 %v119, %v145
    %v147 = vpop.f32.mrf.mxu0
    %v148 = vadd.f32 %v119, %v147
    %149 = vdwg.mxu0
    %152 = vrot.lane.b32.xlu0 %v146, 120
    %v153 = vpop.permute.xlu0 %152
    %154 = vrot.lane.b32.xlu0 %v148, 120
    %v155 = vpop.permute.xlu0 %154
    %158 = vrot.lane.b32.xlu0 %v146, 112
    %v159 = vpop.permute.xlu0 %158
    %160 = vrot.lane.b32.xlu0 %v148, 112
    %v161 = vpop.permute.xlu0 %160
    %164 = vrot.lane.b32.xlu0 %v146, 104
    %v165 = vpop.permute.xlu0 %164
    %166 = vrot.lane.b32.xlu0 %v148, 104
    %v167 = vpop.permute.xlu0 %166
    %v170 = vlaneseq
    %v171 = vshrl.u32 %v170, 7
    %v172 = vlaneseq
    %v173 = vand.u32 %v172, 127
    %vm174 = vcmp.le.s32.totalorder %v173, %v171
    %v175 = vpack.c.bf16 %v146, %v146
    %v176 = vpack.c.bf16 %v153, %v153
    %v177 = vpack.c.bf16 %v159, %v159
    %v178 = vpack.c.bf16 %v165, %v165
    %v179 = vpack.c.bf16 %v148, %v148
    %v180 = vpack.c.bf16 %v155, %v155
    %v181 = vpack.c.bf16 %v161, %v161
    %v182 = vpack.c.bf16 %v167, %v167
    %v184 = vunpack.c.l.b16 %v175
    %v185 = vpack.c.b16 %v184, %v184
    %186 = vrot.lane.b32.xlu0 %v185, 96
    %v187 = vpop.permute.xlu0 %186
    %vm188 = vcmask 64512
    %v190 = vsel %vm188, %v175, 0
    %v193 = vsel %vm188, %v187, 0
    %195 = vmatpush.bf16.xpose.msra.mxu0 0
    %196 = vmatpush.bf16.xpose.msra.mxu0 0
    %197 = vmatpush.bf16.xpose.msra.mxu0 0
    %198 = vmatpush.bf16.xpose.msra.mxu0 0
    %199 = vmatpush.bf16.xpose.msra.mxu0 0
    %200 = vmatpush.bf16.xpose.msra.mxu0 0
    %201 = vmatpush.bf16.xpose.msra.mxu0 0
    %202 = vmatpush.bf16.xpose.msra.mxu0 %v193
    %203 = vmatmul.bf16.gmra.mxu0 %v190
    %v204 = vpop.f32.mrf.mxu0
    %v205 = vadd.f32 0.0, %v204
    %v206 = vpop.f32.mrf.mxu0
    %207 = vdwg.mxu0
    %v209 = vunpack.c.l.b16 %v176
    %v210 = vpack.c.b16 %v209, %v209
    %211 = vrot.lane.b32.xlu0 %v210, 96
    %v212 = vpop.permute.xlu0 %211
    %v214 = vsel %vm188, %v176, 0
    %v217 = vsel %vm188, %v212, 0
    %219 = vmatpush.bf16.xpose.msra.mxu0 0
    %220 = vmatpush.bf16.xpose.msra.mxu0 0
    %221 = vmatpush.bf16.xpose.msra.mxu0 0
    %222 = vmatpush.bf16.xpose.msra.mxu0 0
    %223 = vmatpush.bf16.xpose.msra.mxu0 0
    %224 = vmatpush.bf16.xpose.msra.mxu0 0
    %225 = vmatpush.bf16.xpose.msra.mxu0 0
    %226 = vmatpush.bf16.xpose.msra.mxu0 %v217
    %227 = vmatmul.bf16.gmra.mxu0 %v214
    %v228 = vpop.f32.mrf.mxu0
    %v229 = vadd.f32 0.0, %v228
    %v230 = vpop.f32.mrf.mxu0
    %231 = vdwg.mxu0
    %v233 = vunpack.c.l.b16 %v177
    %v234 = vpack.c.b16 %v233, %v233
    %235 = vrot.lane.b32.xlu0 %v234, 96
    %v236 = vpop.permute.xlu0 %235
    %v238 = vsel %vm188, %v177, 0
    %v241 = vsel %vm188, %v236, 0
    %243 = vmatpush.bf16.xpose.msra.mxu0 0
    %244 = vmatpush.bf16.xpose.msra.mxu0 0
    %245 = vmatpush.bf16.xpose.msra.mxu0 0
    %246 = vmatpush.bf16.xpose.msra.mxu0 0
    %247 = vmatpush.bf16.xpose.msra.mxu0 0
    %248 = vmatpush.bf16.xpose.msra.mxu0 0
    %249 = vmatpush.bf16.xpose.msra.mxu0 0
    %250 = vmatpush.bf16.xpose.msra.mxu0 %v241
    %251 = vmatmul.bf16.gmra.mxu0 %v238
    %v252 = vpop.f32.mrf.mxu0
    %v253 = vadd.f32 0.0, %v252
    %v254 = vpop.f32.mrf.mxu0
    %255 = vdwg.mxu0
    %v257 = vunpack.c.l.b16 %v178
    %v258 = vpack.c.b16 %v257, %v257
    %259 = vrot.lane.b32.xlu0 %v258, 96
    %v260 = vpop.permute.xlu0 %259
    %v262 = vsel %vm188, %v178, 0
    %v265 = vsel %vm188, %v260, 0
    %267 = vmatpush.bf16.xpose.msra.mxu0 0
    %268 = vmatpush.bf16.xpose.msra.mxu0 0
    %269 = vmatpush.bf16.xpose.msra.mxu0 0
    %270 = vmatpush.bf16.xpose.msra.mxu0 0
    %271 = vmatpush.bf16.xpose.msra.mxu0 0
    %272 = vmatpush.bf16.xpose.msra.mxu0 0
    %273 = vmatpush.bf16.xpose.msra.mxu0 0
    %274 = vmatpush.bf16.xpose.msra.mxu0 %v265
    %275 = vmatmul.bf16.gmra.mxu0 %v262
    %v276 = vpop.f32.mrf.mxu0
    %v277 = vadd.f32 0.0, %v276
    %v278 = vpop.f32.mrf.mxu0
    %279 = vdwg.mxu0
    %v281 = vunpack.c.l.b16 %v179
    %v282 = vpack.c.b16 %v281, %v281
    %283 = vrot.lane.b32.xlu0 %v282, 96
    %v284 = vpop.permute.xlu0 %283
    %v286 = vsel %vm188, %v179, 0
    %v289 = vsel %vm188, %v284, 0
    %291 = vmatpush.bf16.xpose.msra.mxu0 0
    %292 = vmatpush.bf16.xpose.msra.mxu0 0
    %293 = vmatpush.bf16.xpose.msra.mxu0 0
    %294 = vmatpush.bf16.xpose.msra.mxu0 0
    %295 = vmatpush.bf16.xpose.msra.mxu0 0
    %296 = vmatpush.bf16.xpose.msra.mxu0 0
    %297 = vmatpush.bf16.xpose.msra.mxu0 0
    %298 = vmatpush.bf16.xpose.msra.mxu0 %v289
    %299 = vmatmul.bf16.gmra.mxu0 %v286
    %v300 = vpop.f32.mrf.mxu0
    %v301 = vadd.f32 0.0, %v300
    %v302 = vpop.f32.mrf.mxu0
    %303 = vdwg.mxu0
    %v305 = vunpack.c.l.b16 %v180
    %v306 = vpack.c.b16 %v305, %v305
    %307 = vrot.lane.b32.xlu0 %v306, 96
    %v308 = vpop.permute.xlu0 %307
    %v310 = vsel %vm188, %v180, 0
    %v313 = vsel %vm188, %v308, 0
    %315 = vmatpush.bf16.xpose.msra.mxu0 0
    %316 = vmatpush.bf16.xpose.msra.mxu0 0
    %317 = vmatpush.bf16.xpose.msra.mxu0 0
    %318 = vmatpush.bf16.xpose.msra.mxu0 0
    %319 = vmatpush.bf16.xpose.msra.mxu0 0
    %320 = vmatpush.bf16.xpose.msra.mxu0 0
    %321 = vmatpush.bf16.xpose.msra.mxu0 0
    %322 = vmatpush.bf16.xpose.msra.mxu0 %v313
    %323 = vmatmul.bf16.gmra.mxu0 %v310
    %v324 = vpop.f32.mrf.mxu0
    %v325 = vadd.f32 0.0, %v324
    %v326 = vpop.f32.mrf.mxu0
    %327 = vdwg.mxu0
    %v329 = vunpack.c.l.b16 %v181
    %v330 = vpack.c.b16 %v329, %v329
    %331 = vrot.lane.b32.xlu0 %v330, 96
    %v332 = vpop.permute.xlu0 %331
    %v334 = vsel %vm188, %v181, 0
    %v337 = vsel %vm188, %v332, 0
    %339 = vmatpush.bf16.xpose.msra.mxu0 0
    %340 = vmatpush.bf16.xpose.msra.mxu0 0
    %341 = vmatpush.bf16.xpose.msra.mxu0 0
    %342 = vmatpush.bf16.xpose.msra.mxu0 0
    %343 = vmatpush.bf16.xpose.msra.mxu0 0
    %344 = vmatpush.bf16.xpose.msra.mxu0 0
    %345 = vmatpush.bf16.xpose.msra.mxu0 0
    %346 = vmatpush.bf16.xpose.msra.mxu0 %v337
    %347 = vmatmul.bf16.gmra.mxu0 %v334
    %v348 = vpop.f32.mrf.mxu0
    %v349 = vadd.f32 0.0, %v348
    %v350 = vpop.f32.mrf.mxu0
    %351 = vdwg.mxu0
    %v353 = vunpack.c.l.b16 %v182
    %v354 = vpack.c.b16 %v353, %v353
    %355 = vrot.lane.b32.xlu0 %v354, 96
    %v356 = vpop.permute.xlu0 %355
    %v358 = vsel %vm188, %v182, 0
    %v361 = vsel %vm188, %v356, 0
    %363 = vmatpush.bf16.xpose.msra.mxu0 0
    %364 = vmatpush.bf16.xpose.msra.mxu0 0
    %365 = vmatpush.bf16.xpose.msra.mxu0 0
    %366 = vmatpush.bf16.xpose.msra.mxu0 0
    %367 = vmatpush.bf16.xpose.msra.mxu0 0
    %368 = vmatpush.bf16.xpose.msra.mxu0 0
    %369 = vmatpush.bf16.xpose.msra.mxu0 0
    %370 = vmatpush.bf16.xpose.msra.mxu0 %v361
    %371 = vmatmul.bf16.gmra.mxu0 %v358
    %v372 = vpop.f32.mrf.mxu0
    %v373 = vadd.f32 0.0, %v372
    %v374 = vpop.f32.mrf.mxu0
    %375 = vdwg.mxu0
    %v376 = vsel %vm174, 1, 0
    %vm377 = vcmp.eq.s32.totalorder %v376, 1
    %v378 = vsel %vm377, %v205, -1e+30
    %v379 = vsel %vm377, %v229, -1e+30
    %v380 = vsel %vm377, %v253, -1e+30
    %v381 = vsel %vm377, %v277, -1e+30
    %v382 = vsel %vm377, %v301, -1e+30
    %v383 = vsel %vm377, %v325, -1e+30
    %v384 = vsel %vm377, %v349, -1e+30
    %v385 = vsel %vm377, %v373, -1e+30
    %v386 = vsel %vm188, %v378, -inf
    %387 = vmax.xlane.f32.xlu0 %v386
    %v388 = vpop.xlane.xlu0 %387
    %v389 = vsel %vm188, %v379, -inf
    %390 = vmax.xlane.f32.xlu0 %v389
    %v391 = vpop.xlane.xlu0 %390
    %v392 = vsel %vm188, %v380, -inf
    %393 = vmax.xlane.f32.xlu0 %v392
    %v394 = vpop.xlane.xlu0 %393
    %v395 = vsel %vm188, %v381, -inf
    %396 = vmax.xlane.f32.xlu0 %v395
    %v397 = vpop.xlane.xlu0 %396
    %v398 = vsel %vm188, %v382, -inf
    %399 = vmax.xlane.f32.xlu0 %v398
    %v400 = vpop.xlane.xlu0 %399
    %v401 = vsel %vm188, %v383, -inf
    %402 = vmax.xlane.f32.xlu0 %v401
    %v403 = vpop.xlane.xlu0 %402
    %v404 = vsel %vm188, %v384, -inf
    %405 = vmax.xlane.f32.xlu0 %v404
    %v406 = vpop.xlane.xlu0 %405
    %v407 = vsel %vm188, %v385, -inf
    %408 = vmax.xlane.f32.xlu0 %v407
    %v409 = vpop.xlane.xlu0 %408
    %v410 = vsub.f32 %v378, %v388
    %v411 = vsub.f32 %v379, %v391
    %v412 = vsub.f32 %v380, %v394
    %v413 = vsub.f32 %v381, %v397
    %v414 = vsub.f32 %v382, %v400
    %v415 = vsub.f32 %v383, %v403
    %v416 = vsub.f32 %v384, %v406
    %v417 = vsub.f32 %v385, %v409
    %v418 = vmul.f32 %v410, 1.442695
    %v419 = vpow.pop %v418
    %v420 = vmul.f32 %v411, 1.442695
    %v421 = vpow.pop %v420
    %v422 = vmul.f32 %v412, 1.442695
    %v423 = vpow.pop %v422
    %v424 = vmul.f32 %v413, 1.442695
    %v425 = vpow.pop %v424
    %v426 = vmul.f32 %v414, 1.442695
    %v427 = vpow.pop %v426
    %v428 = vmul.f32 %v415, 1.442695
    %v429 = vpow.pop %v428
    %v430 = vmul.f32 %v416, 1.442695
    %v431 = vpow.pop %v430
    %v432 = vmul.f32 %v417, 1.442695
    %v433 = vpow.pop %v432
    %v434 = vsel %vm188, %v419, 0.0
    %435 = vadd.xlane.f32.xlu0 %v434
    %v436 = vpop.xlane.xlu0 %435
    %v437 = vsel %vm188, %v421, 0.0
    %438 = vadd.xlane.f32.xlu0 %v437
    %v439 = vpop.xlane.xlu0 %438
    %v440 = vsel %vm188, %v423, 0.0
    %441 = vadd.xlane.f32.xlu0 %v440
    %v442 = vpop.xlane.xlu0 %441
    %v443 = vsel %vm188, %v425, 0.0
    %444 = vadd.xlane.f32.xlu0 %v443
    %v445 = vpop.xlane.xlu0 %444
    %v446 = vsel %vm188, %v427, 0.0
    %447 = vadd.xlane.f32.xlu0 %v446
    %v448 = vpop.xlane.xlu0 %447
    %v449 = vsel %vm188, %v429, 0.0
    %450 = vadd.xlane.f32.xlu0 %v449
    %v451 = vpop.xlane.xlu0 %450
    %v452 = vsel %vm188, %v431, 0.0
    %453 = vadd.xlane.f32.xlu0 %v452
    %v454 = vpop.xlane.xlu0 %453
    %v455 = vsel %vm188, %v433, 0.0
    %456 = vadd.xlane.f32.xlu0 %v455
    %v457 = vpop.xlane.xlu0 %456
    %v458 = vrcp.pop %v436
    %v459 = vrcp.pop %v439
    %v460 = vrcp.pop %v442
    %v461 = vrcp.pop %v445
    %v462 = vrcp.pop %v448
    %v463 = vrcp.pop %v451
    %v464 = vrcp.pop %v454
    %v465 = vrcp.pop %v457
    %v466 = vmul.f32 %v419, %v458
    %v467 = vmul.f32 %v421, %v459
    %v468 = vmul.f32 %v423, %v460
    %v469 = vmul.f32 %v425, %v461
    %v470 = vmul.f32 %v427, %v462
    %v471 = vmul.f32 %v429, %v463
    %v472 = vmul.f32 %v431, %v464
    %v473 = vmul.f32 %v433, %v465
    %v474 = vpack.c.bf16 %v466, %v466
    %v475 = vpack.c.bf16 %v467, %v467
    %v476 = vpack.c.bf16 %v468, %v468
    %v477 = vpack.c.bf16 %v469, %v469
    %v478 = vpack.c.bf16 %v470, %v470
    %v479 = vpack.c.bf16 %v471, %v471
    %v480 = vpack.c.bf16 %v472, %v472
    %v481 = vpack.c.bf16 %v473, %v473
    %482 = vrot.lane.b32.xlu0 %v185, 64
    %v483 = vpop.permute.xlu0 %482
    %v485 = vsel %vm188, %v474, 0
    %vm487 = vcmask 1043456
    %v489 = vsel %vm487, %v483, 0
    %491 = vmatpush.bf16.msra.mxu0 0
    %492 = vmatpush.bf16.msra.mxu0 0
    %493 = vmatpush.bf16.msra.mxu0 0
    %494 = vmatpush.bf16.msra.mxu0 0
    %495 = vmatpush.bf16.msra.mxu0 0
    %496 = vmatpush.bf16.msra.mxu0 0
    %497 = vmatpush.bf16.msra.mxu0 0
    %498 = vmatpush.bf16.msra.mxu0 %v489
    %499 = vmatmul.bf16.gmra.mxu0 %v485
    %v500 = vpop.f32.mrf.mxu0
    %v501 = vadd.f32 0.0, %v500
    %v502 = vpop.f32.mrf.mxu0
    %503 = vdwg.mxu0
    %504 = vrot.lane.b32.xlu0 %v210, 64
    %v505 = vpop.permute.xlu0 %504
    %v507 = vsel %vm188, %v475, 0
    %v510 = vsel %vm487, %v505, 0
    %512 = vmatpush.bf16.msra.mxu0 0
    %513 = vmatpush.bf16.msra.mxu0 0
    %514 = vmatpush.bf16.msra.mxu0 0
    %515 = vmatpush.bf16.msra.mxu0 0
    %516 = vmatpush.bf16.msra.mxu0 0
    %517 = vmatpush.bf16.msra.mxu0 0
    %518 = vmatpush.bf16.msra.mxu0 0
    %519 = vmatpush.bf16.msra.mxu0 %v510
    %520 = vmatmul.bf16.gmra.mxu0 %v507
    %v521 = vpop.f32.mrf.mxu0
    %v522 = vadd.f32 0.0, %v521
    %v523 = vpop.f32.mrf.mxu0
    %524 = vdwg.mxu0
    %525 = vrot.lane.b32.xlu0 %v234, 64
    %v526 = vpop.permute.xlu0 %525
    %v528 = vsel %vm188, %v476, 0
    %v531 = vsel %vm487, %v526, 0
    %533 = vmatpush.bf16.msra.mxu0 0
    %534 = vmatpush.bf16.msra.mxu0 0
    %535 = vmatpush.bf16.msra.mxu0 0
    %536 = vmatpush.bf16.msra.mxu0 0
    %537 = vmatpush.bf16.msra.mxu0 0
    %538 = vmatpush.bf16.msra.mxu0 0
    %539 = vmatpush.bf16.msra.mxu0 0
    %540 = vmatpush.bf16.msra.mxu0 %v531
    %541 = vmatmul.bf16.gmra.mxu0 %v528
    %v542 = vpop.f32.mrf.mxu0
    %v543 = vadd.f32 0.0, %v542
    %v544 = vpop.f32.mrf.mxu0
    %545 = vdwg.mxu0
    %546 = vrot.lane.b32.xlu0 %v258, 64
    %v547 = vpop.permute.xlu0 %546
    %v549 = vsel %vm188, %v477, 0
    %v552 = vsel %vm487, %v547, 0
    %554 = vmatpush.bf16.msra.mxu0 0
    %555 = vmatpush.bf16.msra.mxu0 0
    %556 = vmatpush.bf16.msra.mxu0 0
    %557 = vmatpush.bf16.msra.mxu0 0
    %558 = vmatpush.bf16.msra.mxu0 0
    %559 = vmatpush.bf16.msra.mxu0 0
    %560 = vmatpush.bf16.msra.mxu0 0
    %561 = vmatpush.bf16.msra.mxu0 %v552
    %562 = vmatmul.bf16.gmra.mxu0 %v549
    %v563 = vpop.f32.mrf.mxu0
    %v564 = vadd.f32 0.0, %v563
    %v565 = vpop.f32.mrf.mxu0
    %566 = vdwg.mxu0
    %567 = vrot.lane.b32.xlu0 %v282, 64
    %v568 = vpop.permute.xlu0 %567
    %v570 = vsel %vm188, %v478, 0
    %v573 = vsel %vm487, %v568, 0
    %575 = vmatpush.bf16.msra.mxu0 0
    %576 = vmatpush.bf16.msra.mxu0 0
    %577 = vmatpush.bf16.msra.mxu0 0
    %578 = vmatpush.bf16.msra.mxu0 0
    %579 = vmatpush.bf16.msra.mxu0 0
    %580 = vmatpush.bf16.msra.mxu0 0
    %581 = vmatpush.bf16.msra.mxu0 0
    %582 = vmatpush.bf16.msra.mxu0 %v573
    %583 = vmatmul.bf16.gmra.mxu0 %v570
    %v584 = vpop.f32.mrf.mxu0
    %v585 = vadd.f32 0.0, %v584
    %v586 = vpop.f32.mrf.mxu0
    %587 = vdwg.mxu0
    %588 = vrot.lane.b32.xlu0 %v306, 64
    %v589 = vpop.permute.xlu0 %588
    %v591 = vsel %vm188, %v479, 0
    %v594 = vsel %vm487, %v589, 0
    %596 = vmatpush.bf16.msra.mxu0 0
    %597 = vmatpush.bf16.msra.mxu0 0
    %598 = vmatpush.bf16.msra.mxu0 0
    %599 = vmatpush.bf16.msra.mxu0 0
    %600 = vmatpush.bf16.msra.mxu0 0
    %601 = vmatpush.bf16.msra.mxu0 0
    %602 = vmatpush.bf16.msra.mxu0 0
    %603 = vmatpush.bf16.msra.mxu0 %v594
    %604 = vmatmul.bf16.gmra.mxu0 %v591
    %v605 = vpop.f32.mrf.mxu0
    %v606 = vadd.f32 0.0, %v605
    %v607 = vpop.f32.mrf.mxu0
    %608 = vdwg.mxu0
    %609 = vrot.lane.b32.xlu0 %v330, 64
    %v610 = vpop.permute.xlu0 %609
    %v612 = vsel %vm188, %v480, 0
    %v615 = vsel %vm487, %v610, 0
    %617 = vmatpush.bf16.msra.mxu0 0
    %618 = vmatpush.bf16.msra.mxu0 0
    %619 = vmatpush.bf16.msra.mxu0 0
    %620 = vmatpush.bf16.msra.mxu0 0
    %621 = vmatpush.bf16.msra.mxu0 0
    %622 = vmatpush.bf16.msra.mxu0 0
    %623 = vmatpush.bf16.msra.mxu0 0
    %624 = vmatpush.bf16.msra.mxu0 %v615
    %625 = vmatmul.bf16.gmra.mxu0 %v612
    %v626 = vpop.f32.mrf.mxu0
    %v627 = vadd.f32 0.0, %v626
    %v628 = vpop.f32.mrf.mxu0
    %629 = vdwg.mxu0
    %630 = vrot.lane.b32.xlu0 %v354, 64
    %v631 = vpop.permute.xlu0 %630
    %v633 = vsel %vm188, %v481, 0
    %v636 = vsel %vm487, %v631, 0
    %638 = vmatpush.bf16.msra.mxu0 0
    %639 = vmatpush.bf16.msra.mxu0 0
    %640 = vmatpush.bf16.msra.mxu0 0
    %641 = vmatpush.bf16.msra.mxu0 0
    %642 = vmatpush.bf16.msra.mxu0 0
    %643 = vmatpush.bf16.msra.mxu0 0
    %644 = vmatpush.bf16.msra.mxu0 0
    %645 = vmatpush.bf16.msra.mxu0 %v636
    %646 = vmatmul.bf16.gmra.mxu0 %v633
    %v647 = vpop.f32.mrf.mxu0
    %v648 = vadd.f32 0.0, %v647
    %v649 = vpop.f32.mrf.mxu0
    %650 = vdwg.mxu0
    %653 = vrot.lane.b32.xlu0 %v522, 8
    %v654 = vpop.permute.xlu0 %653
    %655 = vrot.lane.b32.xlu0 %v606, 8
    %v656 = vpop.permute.xlu0 %655
    %661 = vrot.lane.b32.xlu0 %v543, 16
    %v662 = vpop.permute.xlu0 %661
    %663 = vrot.lane.b32.xlu0 %v627, 16
    %v664 = vpop.permute.xlu0 %663
    %669 = vrot.lane.b32.xlu0 %v564, 24
    %v670 = vpop.permute.xlu0 %669
    %671 = vrot.lane.b32.xlu0 %v648, 24
    %v672 = vpop.permute.xlu0 %671
    %v675 = vsel %vm188, %v501, %v654
    %v676 = vsel %vm188, %v585, %v656
    %vm677 = vcmask 130048
    %v678 = vsel %vm677, %v675, %v662
    %v679 = vsel %vm677, %v676, %v664
    %vm680 = vcmask 195584
    %v681 = vsel %vm680, %v678, %v670
    %v682 = vsel %vm680, %v679, %v672
    %v683 = vpack.c.bf16 %v682, %v681
    %v684 = vld [vmem:[%s5] sm:$0xf]
    %v685 = vld [vmem:[%s5 + $0x4] sm:$0xf]
    %v686 = vld [vmem:[%s5 + $0x8] sm:$0xf]
    %v687 = vld [vmem:[%s5 + $0xc] sm:$0xf]
    %v688 = vld [vmem:[%s6] sm:$0x1]
    %v690 = vperm.slane %v688, 0
    %v696 = vunpack.c.l.b16 %v684
    %v697 = vunpack.c.l.b16 %v685
    %v698 = vunpack.c.l.b16 %v686
    %v699 = vunpack.c.l.b16 %v687
    %v700 = vpack.c.b16 %v697, %v696
    %v701 = vpack.c.b16 %v699, %v698
    %v705 = vsel %vm50, %v683, 0
    %707 = vmatpush.bf16.msra.mxu0 0
    %708 = vmatpush.bf16.msra.mxu0 0
    %709 = vmatpush.bf16.msra.mxu0 0
    %710 = vmatpush.bf16.msra.mxu0 0
    %711 = vmatpush.bf16.msra.mxu0 0
    %712 = vmatpush.bf16.msra.mxu0 0
    %713 = vmatpush.bf16.msra.mxu0 %v701
    %714 = vmatpush.bf16.msra.mxu0 %v700
    %715 = vmatmul.bf16.gmra.mxu0 %v705
    %v716 = vpop.f32.mrf.mxu0
    %v717 = vadd.f32 %v690, %v716
    %v718 = vpop.f32.mrf.mxu0
    %v719 = vadd.f32 %v690, %v718
    %720 = vdwg.mxu0
    %v721 = vadd.f32 %v46, %v717
    %v722 = vadd.f32 %v47, %v719
    %v723 = vld [vmem:[%s7] sm:$0x1]
    %v724 = vld [vmem:[%s8] sm:$0x1]
    %v725 = vsel %vm50, %v721, 0.0
    %726 = vadd.xlane.f32.xlu0 %v725
    %v727 = vpop.xlane.xlu0 %726
    %v728 = vsel %vm50, %v722, 0.0
    %729 = vadd.xlane.f32.xlu0 %v728
    %v730 = vpop.xlane.xlu0 %729
    %v731 = vmul.f32 %v727, %v63
    %v732 = vmul.f32 %v730, %v63
    %v733 = vsub.f32 %v721, %v731
    %v734 = vsub.f32 %v722, %v732
    %v735 = vmul.f32 %v733, %v733
    %v736 = vmul.f32 %v734, %v734
    %v737 = vsel %vm50, %v735, 0.0
    %738 = vadd.xlane.f32.xlu0 %v737
    %v739 = vpop.xlane.xlu0 %738
    %v740 = vsel %vm50, %v736, 0.0
    %741 = vadd.xlane.f32.xlu0 %v740
    %v742 = vpop.xlane.xlu0 %741
    %v743 = vmul.f32 %v739, %v63
    %v744 = vmul.f32 %v742, %v63
    %v745 = vadd.f32 %v743, 1e-05
    %v746 = vadd.f32 %v744, 1e-05
    %v747 = vrsqrt.pop %v745
    %v748 = vmul.f32 %v747, %v745
    %v749 = vmul.f32 %v748, %v747
    %v750 = vmul.f32 0.5, %v749
    %v751 = vsub.f32 1.5, %v750
    %v752 = vmul.f32 %v747, %v751
    %vm753 = vweird.f32 %v745
    %vm754 = vweird.f32 %v747
    %vm755 = vmor %vm753, %vm754
    %v756 = vsel %vm755, %v747, %v752
    %v757 = vrsqrt.pop %v746
    %v758 = vmul.f32 %v757, %v746
    %v759 = vmul.f32 %v758, %v757
    %v760 = vmul.f32 0.5, %v759
    %v761 = vsub.f32 1.5, %v760
    %v762 = vmul.f32 %v757, %v761
    %vm763 = vweird.f32 %v746
    %vm764 = vweird.f32 %v757
    %vm765 = vmor %vm763, %vm764
    %v766 = vsel %vm765, %v757, %v762
    %v767 = vmul.f32 %v733, %v756
    %v768 = vmul.f32 %v734, %v766
    %v770 = vperm.slane %v723, 0
    %v772 = vmul.f32 %v767, %v770
    %v773 = vmul.f32 %v768, %v770
    %v775 = vperm.slane %v724, 0
    %v777 = vadd.f32 %v772, %v775
    %v778 = vadd.f32 %v773, %v775
    %v779 = vpack.c.bf16 %v778, %v777
    %v780 = vld [vmem:[%s9] sm:$0xf]
    %v781 = vld [vmem:[%s9 + $0x4] sm:$0xf]
    %v782 = vld [vmem:[%s9 + $0x8] sm:$0xf]
    %v783 = vld [vmem:[%s9 + $0xc] sm:$0xf]
    %v784 = vld [vmem:[%s10] sm:$0x1]
    %v786 = vperm.slane %v784, 0
    %v792 = vunpack.c.l.b16 %v780
    %v793 = vunpack.c.l.b16 %v781
    %v794 = vunpack.c.l.b16 %v782
    %v795 = vunpack.c.l.b16 %v783
    %v796 = vpack.c.b16 %v793, %v792
    %v797 = vpack.c.b16 %v795, %v794
    %v801 = vsel %vm50, %v779, 0
    %803 = vmatpush.bf16.msra.mxu0 0
    %804 = vmatpush.bf16.msra.mxu0 0
    %805 = vmatpush.bf16.msra.mxu0 0
    %806 = vmatpush.bf16.msra.mxu0 0
    %807 = vmatpush.bf16.msra.mxu0 0
    %808 = vmatpush.bf16.msra.mxu0 0
    %809 = vmatpush.bf16.msra.mxu0 %v797
    %810 = vmatpush.bf16.msra.mxu0 %v796
    %811 = vmatmul.bf16.gmra.mxu0 %v801
    %v812 = vpop.f32.mrf.mxu0
    %v813 = vadd.f32 %v786, %v812
    %v814 = vpop.f32.mrf.mxu0
    %v815 = vadd.f32 %v786, %v814
    %816 = vdwg.mxu0
    %v817 = vmul.f32 %v813, 0.5
    %v818 = vmul.f32 %v815, 0.5
    %v819 = vmul.f32 %v813, 0.044715
    %v820 = vmul.f32 %v815, 0.044715
    %v821 = vmul.f32 %v819, %v813
    %v822 = vmul.f32 %v820, %v815
    %v823 = vmul.f32 %v821, %v813
    %v824 = vmul.f32 %v822, %v815
    %v825 = vadd.f32 %v813, %v823
    %v826 = vadd.f32 %v815, %v824
    %v827 = vmul.f32 %v825, 0.7978846
    %v828 = vmul.f32 %v826, 0.7978846
    %v829 = vtanh.pop %v827
    %v830 = vtanh.pop %v828
    %v831 = vadd.f32 %v829, 1.0
    %v832 = vadd.f32 %v830, 1.0
    %v833 = vmul.f32 %v817, %v831
    %v834 = vmul.f32 %v818, %v832
    %v835 = vpack.c.bf16 %v834, %v833
    %v836 = vld [vmem:[%s11] sm:$0xf]
    %v837 = vld [vmem:[%s11 + $0x4] sm:$0xf]
    %v838 = vld [vmem:[%s11 + $0x8] sm:$0xf]
    %v839 = vld [vmem:[%s11 + $0xc] sm:$0xf]
    %v840 = vld [vmem:[%s11 + $0x10] sm:$0xf]
    %v841 = vld [vmem:[%s11 + $0x14] sm:$0xf]
    %v842 = vld [vmem:[%s11 + $0x18] sm:$0xf]
    %v843 = vld [vmem:[%s11 + $0x1c] sm:$0xf]
    %v844 = vld [vmem:[%s11 + $0x20] sm:$0xf]
    %v845 = vld [vmem:[%s11 + $0x24] sm:$0xf]
    %v846 = vld [vmem:[%s11 + $0x28] sm:$0xf]
    %v847 = vld [vmem:[%s11 + $0x2c] sm:$0xf]
    %v848 = vld [vmem:[%s11 + $0x30] sm:$0xf]
    %v849 = vld [vmem:[%s11 + $0x34] sm:$0xf]
    %v850 = vld [vmem:[%s11 + $0x38] sm:$0xf]
    %v851 = vld [vmem:[%s11 + $0x3c] sm:$0xf]
    %v852 = vld [vmem:[%s12] sm:$0x1]
    %v854 = vperm.slane %v852, 0
    %v872 = vunpack.c.l.b16 %v836
    %v873 = vunpack.c.l.b16 %v837
    %v874 = vunpack.c.l.b16 %v838
    %v875 = vunpack.c.l.b16 %v839
    %v876 = vunpack.c.l.b16 %v840
    %v877 = vunpack.c.l.b16 %v841
    %v878 = vunpack.c.l.b16 %v842
    %v879 = vunpack.c.l.b16 %v843
    %v880 = vunpack.c.l.b16 %v844
    %v881 = vunpack.c.l.b16 %v845
    %v882 = vunpack.c.l.b16 %v846
    %v883 = vunpack.c.l.b16 %v847
    %v884 = vunpack.c.l.b16 %v848
    %v885 = vunpack.c.l.b16 %v849
    %v886 = vunpack.c.l.b16 %v850
    %v887 = vunpack.c.l.b16 %v851
    %v888 = vpack.c.b16 %v873, %v872
    %v889 = vpack.c.b16 %v875, %v874
    %v890 = vpack.c.b16 %v877, %v876
    %v891 = vpack.c.b16 %v879, %v878
    %v892 = vpack.c.b16 %v881, %v880
    %v893 = vpack.c.b16 %v883, %v882
    %v894 = vpack.c.b16 %v885, %v884
    %v895 = vpack.c.b16 %v887, %v886
    %904 = vmatpush.bf16.msra.mxu0 %v895
    %905 = vmatpush.bf16.msra.mxu0 %v894
    %906 = vmatpush.bf16.msra.mxu0 %v893
    %907 = vmatpush.bf16.msra.mxu0 %v892
    %908 = vmatpush.bf16.msra.mxu0 %v891
    %909 = vmatpush.bf16.msra.mxu0 %v890
    %910 = vmatpush.bf16.msra.mxu0 %v889
    %911 = vmatpush.bf16.msra.mxu0 %v888
    %912 = vmatmul.bf16.gmra.mxu0 %v835
    %v913 = vpop.f32.mrf.mxu0
    %v914 = vadd.f32 %v854, %v913
    %v915 = vpop.f32.mrf.mxu0
    %v916 = vadd.f32 %v854, %v915
    %917 = vdwg.mxu0
    %v918 = vadd.f32 %v721, %v914
    %v919 = vadd.f32 %v722, %v916
    %920 = vst.msk [vmem:[#allocation2] sm:$0xff] %vm50, %v918
    %921 = vst.msk [vmem:[#allocation2 + $0x8] sm:$0xff] %vm50, %v919
    // Predicated region
    $region54: #{tpu_custom_call.1} parent=1 // pred_check
      _
    $region55: #{tpu_custom_call.1} parent=1 // pred_check_branch
      %923 = sbr.rel (0) target = $region57
    $region56: #{tpu_custom_call.1} parent=1 // pred_region
      %925 = vsyncadd [#allocation3], 0
      %s926 = sshll.u32 [#allocation2], 4
      %s927 = int_to_ptr.vmem [resolvable:$true] %s926
      %s928 = sshll.u32 %s13, 4
      %s929 = int_to_ptr.hbm [resolvable:$true] %s928
      %934 = dma.vmem_to_hbm [thread:$0]  %s927, 256, %s929, [#allocation3], 128, 128, 8
    $region57: #{tpu_custom_call.1} parent=1 // pred_fallthru
      _
    // Predicated region
    $region58: #{tpu_custom_call.1} parent=1 // pred_check
      _
    $region59: #{tpu_custom_call.1} parent=1 // pred_check_branch
      %936 = sbr.rel (0) target = $region61
    $region60: #{tpu_custom_call.1} parent=1 // pred_region
      %938 = dma.done [#allocation3], 256
    $region61: #{tpu_custom_call.1} parent=1 // pred_fallthru
      _
    %939 = vsyncpa [#allocation3], 1

</llo_original>
